<compile_context>
chip_gen: v7x
topology: tpu7x:2x2x1
jax: 0.10.0
libtpu: 0.0.40
codegen_flags: <defaults>
</compile_context>

<pallas_src>
import functools
import math

import jax
import jax.numpy as jnp
from jax import lax
from jax.experimental import pallas as pl
from jax.experimental.pallas import tpu as pltpu


# --------------------------------------------------------------------------
# Fused kernel: x construction + cosine similarity + cluster assignment +
# pos/neg split + contrastive loss + pairwise cluster-separation loss.
# --------------------------------------------------------------------------
def _fused_kernel(u_ref, it_ref, wui_ref, tb_ref, c_ref, cos_ref, trow_ref,
                  o_ref, *, k, inv_temp):
    u = u_ref[...]              # (N, D) f32  user embeddings
    it = it_ref[...]            # (N, D) f32  item embeddings
    c = c_ref[...]              # (K, H) f32  cluster embeddings
    cos_t = cos_ref[...]        # (N, 1) f32  cos(times)
    t_row = trow_ref[...]       # (1, N) f32  timestamps (lane-major)
    N, D = u.shape
    K, H = c.shape
    eps2 = 1e-16                # (eps = 1e-8 on the norm product)

    ones_n1 = jnp.ones((N, 1), jnp.float32)
    ones_1h = jnp.ones((1, H), jnp.float32)
    ones_h1 = jnp.ones((H, 1), jnp.float32)

    # ---- x = u@Wu + i@Wi + cos(t)*wt_fold + b_fold (time Linear folded) -----
    x = jnp.dot(u, wui_ref[0:D, :], preferred_element_type=jnp.float32)
    x = x + jnp.dot(it, wui_ref[D:2 * D, :], preferred_element_type=jnp.float32)
    x = x + cos_t * tb_ref[0:1, :] + tb_ref[1:2, :]                     # (N,H)

    # ---- similarity in lane-dense (K, N) layout ------------------------------
    dot_kn = lax.dot_general(c, x, (((1,), (1,)), ((), ())),
                             preferred_element_type=jnp.float32)        # (K,N)
    cc = c * c
    csq_k1 = jnp.dot(cc, ones_h1, preferred_element_type=jnp.float32)   # (K,1)
    csq_1k = lax.dot_general(ones_1h, cc, (((1,), (1,)), ((), ())),
                             preferred_element_type=jnp.float32)        # (1,K)
    xsq_1n = lax.dot_general(ones_1h, x * x, (((1,), (1,)), ((), ())),
                             preferred_element_type=jnp.float32)        # (1,N)

    # single exact rsqrt (EUP) shared by normsim and contrastive paths.
    # NOTE: original normsim path has no eps; only matters for zero norms.
    inv_denom = lax.rsqrt(jnp.maximum(csq_k1 * xsq_1n, eps2))           # (K,N)
    cos_kn = dot_kn * inv_denom
    normsim = cos_kn * 0.5 + 0.5

    kr = lax.broadcasted_iota(jnp.int32, (K, N), 0)   # cluster index per row
    nc = lax.broadcasted_iota(jnp.int32, (K, N), 1)   # sample index per col

    # closest cluster per sample (first index of the per-sample max)
    col_max = jnp.max(normsim, axis=0, keepdims=True)                   # (1,N)
    closest = jnp.min(jnp.where(normsim >= col_max, kr, K),
                      axis=0, keepdims=True)                            # (1,N)
    member = kr == closest                                              # (K,N)

    # per-cluster "medoid": first member index with max similarity
    msim = jnp.where(member, normsim, -jnp.inf)                         # (K,N)
    row_max = jnp.max(msim, axis=1, keepdims=True)                      # (K,1)
    med_idx = jnp.min(jnp.where(msim >= row_max, nc, N),
                      axis=1, keepdims=True)                            # (K,1)
    onehot = nc == med_idx                                              # (K,N)
    # lane-sum via MXU dot (empty cluster -> mid_time = t[0]; masked by valid)
    mid_time = jnp.dot(jnp.where(onehot, t_row, 0.0), ones_n1,
                       preferred_element_type=jnp.float32)              # (K,1)

    # time-distance threshold computed in-kernel: (max(t) - min(t)) / k
    thr = (jnp.max(t_row) - jnp.min(t_row)) / k

    # strict '<' matches the reference select_pos_nev()
    within = jnp.abs(t_row - mid_time) < thr                            # (K,N)
    pos = member & within
    neg = member & jnp.logical_not(within)
    npos = jnp.dot(pos.astype(jnp.float32), ones_n1,
                   preferred_element_type=jnp.float32)                  # (K,1)
    nneg = jnp.dot(neg.astype(jnp.float32), ones_n1,
                   preferred_element_type=jnp.float32)                  # (K,1)
    valid = ((npos > 0.0) & (nneg > 0.0)).astype(jnp.float32)           # (K,1)

    # contrastive loss (InfoNCE-style), max-stabilized: since cos <= 1,
    # shift exponents by 1/T -> exp args <= 0, safe for any temperature.
    s_sh = (cos_kn - 1.0) * inv_temp                                    # s - 1/T
    exp_sh = jnp.exp(s_sh)
    neg_sum_sh = jnp.dot(jnp.where(neg, exp_sh, 0.0), ones_n1,
                         preferred_element_type=jnp.float32)            # (K,1)
    loss_el = jnp.where(pos, jnp.log(exp_sh + neg_sum_sh) - s_sh, 0.0)  # (K,N)
    loss_sum = jnp.dot(loss_el, ones_n1,
                       preferred_element_type=jnp.float32)              # (K,1)
    loss_per_c = loss_sum / jnp.maximum(npos, 1.0)                      # (K,1)
    n_valid = jnp.sum(valid)
    total = jnp.sum(loss_per_c * valid) / jnp.maximum(n_valid, 1.0)

    # clloss: negative mean pairwise L2 distance between cluster embeddings
    gram = lax.dot_general(c, c, (((1,), (1,)), ((), ())),
                           preferred_element_type=jnp.float32)          # (K,K)
    d2 = jnp.maximum(csq_k1 + csq_1k - 2.0 * gram, 0.0)                 # (K,K)
    d = jnp.sqrt(d2)
    cl = -(0.5 * jnp.sum(d)) / (K * (K - 1) / 2.0)

    o_ref[0, 0] = total + cl


# --------------------------------------------------------------------------
# One-time parameter preprocessing (hoisted out of the per-forward path).
# --------------------------------------------------------------------------
def prepare_params(params):
    D = params["w_time"].shape[0]
    H = params["b_cat"].shape[0]
    w_cat_t = params["w_cat"].T                                 # (3D, H)
    w_ui = w_cat_t[:2 * D]                                      # (2D, H) = [Wu; Wi]
    wte = w_cat_t[2 * D:]                                       # (D, H)
    wt_fold = params["w_time"].reshape(1, D) @ wte              # (1, H)
    b_fold = params["b_time"].reshape(1, D) @ wte + params["b_cat"].reshape(1, H)
    tb_fold = jnp.concatenate([wt_fold, b_fold], axis=0)        # (2, H)
    return {"w_ui": w_ui, "tb_fold": tb_fold,
            "cluster_embs": params["cluster_embs"]}


# --------------------------------------------------------------------------
# Forward wrapper: single fused pallas_call.
# --------------------------------------------------------------------------
@functools.partial(jax.jit, static_argnames=("k", "temperature"))
def peroid_cluster_forward(user_embs, item_embs, times, prep, k, temperature):
    N, D = user_embs.shape
    K, H = prep["cluster_embs"].shape

    t_f = times.astype(jnp.float32)
    cos_t = jnp.cos(t_f).reshape(N, 1)                          # (N, 1)
    t_row = t_f.reshape(1, N)                                   # (1, N)

    kernel = functools.partial(_fused_kernel, k=k,
                               inv_temp=float(1.0 / temperature))
    loss = pl.pallas_call(
        kernel,
        out_shape=jax.ShapeDtypeStruct((1, 1), jnp.float32),
        grid=(1,),
        in_specs=[
            pl.BlockSpec((N, D), lambda i: (0, 0)),       # user embeddings
            pl.BlockSpec((N, D), lambda i: (0, 0)),       # item embeddings
            pl.BlockSpec((2 * D, H), lambda i: (0, 0)),   # [Wu; Wi]
            pl.BlockSpec((2, H), lambda i: (0, 0)),       # [wt_fold; b_fold]
            pl.BlockSpec((K, H), lambda i: (0, 0)),       # cluster_embs
            pl.BlockSpec((N, 1), lambda i: (0, 0)),       # cos(times)
            pl.BlockSpec((1, N), lambda i: (0, 0)),       # times (lane-major)
        ],
        out_specs=pl.BlockSpec((1, 1), lambda i: (0, 0),
                               memory_space=pltpu.MemorySpace.SMEM),
        compiler_params=pltpu.CompilerParams(
            dimension_semantics=("arbitrary",)),
    )(user_embs, item_embs, prep["w_ui"], prep["tb_fold"],
      prep["cluster_embs"], cos_t, t_row)

    return loss[0, 0]


# --------------------------------------------------------------------------
# Deterministic parameter init (mirrors PyTorch __init__ shapes)
# --------------------------------------------------------------------------
def init_params(key, k, dimension=64, hidden_dim=64):
    k1, k2, k3, k4, k5 = jax.random.split(key, 5)
    # time_encond_layer = nn.Linear(1, dimension)
    lim_t = 1.0 / math.sqrt(1.0)
    w_time = jax.random.uniform(k1, (dimension, 1), jnp.float32, -lim_t, lim_t)
    b_time = jax.random.uniform(k2, (dimension,), jnp.float32, -lim_t, lim_t)
    # concat_layer = nn.Linear(dimension * 3, 64)
    lim_c = 1.0 / math.sqrt(3.0 * dimension)
    w_cat = jax.random.uniform(k3, (hidden_dim, 3 * dimension), jnp.float32, -lim_c, lim_c)
    b_cat = jax.random.uniform(k4, (hidden_dim,), jnp.float32, -lim_c, lim_c)
    # cluster_embs: xavier_uniform_((k, hidden_dim))
    lim_x = math.sqrt(6.0 / (k + hidden_dim))
    cluster_embs = jax.random.uniform(k5, (k, hidden_dim), jnp.float32, -lim_x, lim_x)
    return {"w_time": w_time, "b_time": b_time,
            "w_cat": w_cat, "b_cat": b_cat,
            "cluster_embs": cluster_embs}


if __name__ == "__main__":
    K_CLUSTERS = 4
    DIM = 64
    N = 16
    TEMPERATURE = 0.5

    key = jax.random.PRNGKey(0)
    kp, ku, ki, kt = jax.random.split(key, 4)
    params = init_params(kp, K_CLUSTERS, dimension=DIM, hidden_dim=64)
    prep = prepare_params(params)                 # hoisted, done once

    user_embs = jax.random.normal(ku, (N, DIM), jnp.float32)
    item_embs = jax.random.normal(ki, (N, DIM), jnp.float32)
    times = jax.random.randint(kt, (N,), 0, 100, jnp.int32)

    # TODO(synk): stateful bits of the PyTorch module (cluster_dic bookkeeping,
    # labels(), __init_emb__, uniform_sampling_timestamps) have no kernel
    # equivalent; forward-pass loss only.
    loss = peroid_cluster_forward(user_embs, item_embs, times, prep,
                                  K_CLUSTERS, TEMPERATURE)
    jax.block_until_ready(loss)
    assert jnp.isfinite(loss)
    print("KERNEL_OK")
</pallas_src>

<mosaic_0001>
module attributes {stable_mosaic.version = 11 : i64} {
  func.func @_fused_kernel(%arg0: i32, %arg1: memref<16x64xf32, #tpu.memory_space<vmem>>, %arg2: memref<16x64xf32, #tpu.memory_space<vmem>>, %arg3: memref<128x64xf32, #tpu.memory_space<vmem>>, %arg4: memref<2x64xf32, #tpu.memory_space<vmem>>, %arg5: memref<4x64xf32, #tpu.memory_space<vmem>>, %arg6: memref<16x1xf32, #tpu.memory_space<vmem>>, %arg7: memref<1x16xf32, #tpu.memory_space<vmem>>, %arg8: memref<1x1xf32, #tpu.memory_space<smem>>) attributes {dimension_semantics = [#tpu.dimension_semantics<arbitrary>], iteration_bounds = array<i64: 1>, scalar_prefetch = 0 : i64, scratch_operands = 0 : i64, tpu.core_type = #tpu.core_type<tc>, window_params = [{pipeline_mode = #tpu.pipeline_mode<synchronous>, transform_indices = @transform_0, window_bounds = array<i64: 16, 64>}, {pipeline_mode = #tpu.pipeline_mode<synchronous>, transform_indices = @transform_1, window_bounds = array<i64: 16, 64>}, {pipeline_mode = #tpu.pipeline_mode<synchronous>, transform_indices = @transform_2, window_bounds = array<i64: 128, 64>}, {pipeline_mode = #tpu.pipeline_mode<synchronous>, transform_indices = @transform_3, window_bounds = array<i64: 2, 64>}, {pipeline_mode = #tpu.pipeline_mode<synchronous>, transform_indices = @transform_4, window_bounds = array<i64: 4, 64>}, {pipeline_mode = #tpu.pipeline_mode<synchronous>, transform_indices = @transform_5, window_bounds = array<i64: 16, 1>}, {pipeline_mode = #tpu.pipeline_mode<synchronous>, transform_indices = @transform_6, window_bounds = array<i64: 1, 16>}, {transform_indices = @transform_7, window_bounds = array<i64: 1, 1>}]} {
    %c0 = arith.constant 0 : index
    %c0_0 = arith.constant 0 : index
    %0 = vector.load %arg1[%c0, %c0_0] : memref<16x64xf32, #tpu.memory_space<vmem>>, vector<16x64xf32>
    %c0_1 = arith.constant 0 : index
    %c0_2 = arith.constant 0 : index
    %1 = vector.load %arg2[%c0_1, %c0_2] : memref<16x64xf32, #tpu.memory_space<vmem>>, vector<16x64xf32>
    %c0_3 = arith.constant 0 : index
    %c0_4 = arith.constant 0 : index
    %2 = vector.load %arg5[%c0_3, %c0_4] : memref<4x64xf32, #tpu.memory_space<vmem>>, vector<4x64xf32>
    %c0_5 = arith.constant 0 : index
    %c0_6 = arith.constant 0 : index
    %3 = vector.load %arg6[%c0_5, %c0_6] : memref<16x1xf32, #tpu.memory_space<vmem>>, vector<16x1xf32>
    %c0_7 = arith.constant 0 : index
    %c0_8 = arith.constant 0 : index
    %4 = vector.load %arg7[%c0_7, %c0_8] : memref<1x16xf32, #tpu.memory_space<vmem>>, vector<1x16xf32>
    %cst = arith.constant 1.000000e+00 : f32
    %5 = vector.broadcast %cst : f32 to vector<16x1xf32>
    %cst_9 = arith.constant 1.000000e+00 : f32
    %6 = vector.broadcast %cst_9 : f32 to vector<1x64xf32>
    %cst_10 = arith.constant 1.000000e+00 : f32
    %7 = vector.broadcast %cst_10 : f32 to vector<64x1xf32>
    %c0_11 = arith.constant 0 : index
    %c0_12 = arith.constant 0 : index
    %8 = vector.load %arg3[%c0_11, %c0_12] : memref<128x64xf32, #tpu.memory_space<vmem>>, vector<64x64xf32>
    %cst_13 = arith.constant dense<0.000000e+00> : vector<16x64xf32>
    %9 = tpu.matmul %0, %8, %cst_13 {dimension_numbers = #tpu.dot_dimension_numbers<[1], [0], [0], [1], [0, 0, 1, 1], [], []>} : vector<16x64xf32>, vector<64x64xf32>, vector<16x64xf32> -> vector<16x64xf32>
    %c64 = arith.constant 64 : index
    %c0_14 = arith.constant 0 : index
    %10 = vector.load %arg3[%c64, %c0_14] : memref<128x64xf32, #tpu.memory_space<vmem>>, vector<64x64xf32>
    %cst_15 = arith.constant dense<0.000000e+00> : vector<16x64xf32>
    %11 = tpu.matmul %1, %10, %cst_15 {dimension_numbers = #tpu.dot_dimension_numbers<[1], [0], [0], [1], [0, 0, 1, 1], [], []>} : vector<16x64xf32>, vector<64x64xf32>, vector<16x64xf32> -> vector<16x64xf32>
    %12 = arith.addf %9, %11 : vector<16x64xf32>
    %c0_16 = arith.constant 0 : index
    %c0_17 = arith.constant 0 : index
    %13 = vector.load %arg4[%c0_16, %c0_17] : memref<2x64xf32, #tpu.memory_space<vmem>>, vector<1x64xf32>
    %14 = vector.broadcast %3 : vector<16x1xf32> to vector<16x64xf32>
    %15 = vector.broadcast %13 : vector<1x64xf32> to vector<16x64xf32>
    %16 = arith.mulf %14, %15 : vector<16x64xf32>
    %17 = arith.addf %12, %16 : vector<16x64xf32>
    %c1 = arith.constant 1 : index
    %c0_18 = arith.constant 0 : index
    %18 = vector.load %arg4[%c1, %c0_18] : memref<2x64xf32, #tpu.memory_space<vmem>>, vector<1x64xf32>
    %19 = vector.broadcast %18 : vector<1x64xf32> to vector<16x64xf32>
    %20 = arith.addf %17, %19 : vector<16x64xf32>
    %cst_19 = arith.constant dense<0.000000e+00> : vector<4x16xf32>
    %21 = tpu.matmul %2, %20, %cst_19 {dimension_numbers = #tpu.dot_dimension_numbers<[1], [1], [0], [0], [0, 0, 1, 0], [], []>} : vector<4x64xf32>, vector<16x64xf32>, vector<4x16xf32> -> vector<4x16xf32>
    %22 = arith.mulf %2, %2 : vector<4x64xf32>
    %cst_20 = arith.constant dense<0.000000e+00> : vector<4x1xf32>
    %23 = tpu.matmul %22, %7, %cst_20 {dimension_numbers = #tpu.dot_dimension_numbers<[1], [0], [0], [1], [0, 0, 1, 1], [], []>} : vector<4x64xf32>, vector<64x1xf32>, vector<4x1xf32> -> vector<4x1xf32>
    %cst_21 = arith.constant dense<0.000000e+00> : vector<1x4xf32>
    %24 = tpu.matmul %6, %22, %cst_21 {dimension_numbers = #tpu.dot_dimension_numbers<[1], [1], [0], [0], [0, 0, 1, 0], [], []>} : vector<1x64xf32>, vector<4x64xf32>, vector<1x4xf32> -> vector<1x4xf32>
    %25 = arith.mulf %20, %20 : vector<16x64xf32>
    %cst_22 = arith.constant dense<0.000000e+00> : vector<1x16xf32>
    %26 = tpu.matmul %6, %25, %cst_22 {dimension_numbers = #tpu.dot_dimension_numbers<[1], [1], [0], [0], [0, 0, 1, 0], [], []>} : vector<1x64xf32>, vector<16x64xf32>, vector<1x16xf32> -> vector<1x16xf32>
    %27 = vector.broadcast %23 : vector<4x1xf32> to vector<4x16xf32>
    %28 = vector.broadcast %26 : vector<1x16xf32> to vector<4x16xf32>
    %29 = arith.mulf %27, %28 : vector<4x16xf32>
    %cst_23 = arith.constant 1.000000e-16 : f32
    %30 = vector.broadcast %cst_23 : f32 to vector<4x16xf32>
    %31 = arith.maximumf %29, %30 : vector<4x16xf32>
    %32 = math.rsqrt %31 : vector<4x16xf32>
    %33 = arith.mulf %21, %32 : vector<4x16xf32>
    %cst_24 = arith.constant 5.000000e-01 : f32
    %34 = vector.broadcast %cst_24 : f32 to vector<4x16xf32>
    %35 = arith.mulf %33, %34 : vector<4x16xf32>
    %cst_25 = arith.constant 5.000000e-01 : f32
    %36 = vector.broadcast %cst_25 : f32 to vector<4x16xf32>
    %37 = arith.addf %35, %36 : vector<4x16xf32>
    %38 = tpu.iota {dimensions = array<i32: 0>} : vector<4x16xi32>
    %39 = tpu.iota {dimensions = array<i32: 1>} : vector<4x16xi32>
    %cst_26 = arith.constant dense<0xFF800000> : vector<16xf32>
    %40 = vector.multi_reduction <maximumf>, %37, %cst_26 [0] : vector<4x16xf32> to vector<16xf32>
    %41 = vector.shape_cast %40 : vector<16xf32> to vector<1x16xf32>
    %42 = vector.broadcast %41 : vector<1x16xf32> to vector<4x16xf32>
    %43 = arith.cmpf oge, %37, %42 : vector<4x16xf32>
    %c4_i32 = arith.constant 4 : i32
    %44 = vector.broadcast %c4_i32 : i32 to vector<4x16xi32>
    %45 = arith.select %43, %38, %44 : vector<4x16xi1>, vector<4x16xi32>
    %cst_27 = arith.constant dense<2147483647> : vector<16xi32>
    %46 = vector.multi_reduction <minsi>, %45, %cst_27 [0] : vector<4x16xi32> to vector<16xi32>
    %47 = vector.shape_cast %46 : vector<16xi32> to vector<1x16xi32>
    %48 = vector.broadcast %47 : vector<1x16xi32> to vector<4x16xi32>
    %49 = arith.cmpi eq, %38, %48 : vector<4x16xi32>
    %cst_28 = arith.constant 0xFF800000 : f32
    %50 = vector.broadcast %cst_28 : f32 to vector<4x16xf32>
    %51 = arith.select %49, %37, %50 : vector<4x16xi1>, vector<4x16xf32>
    %cst_29 = arith.constant dense<0xFF800000> : vector<4xf32>
    %52 = vector.multi_reduction <maximumf>, %51, %cst_29 [1] : vector<4x16xf32> to vector<4xf32>
    %53 = vector.shape_cast %52 : vector<4xf32> to vector<4x1xf32>
    %54 = vector.broadcast %53 : vector<4x1xf32> to vector<4x16xf32>
    %55 = arith.cmpf oge, %51, %54 : vector<4x16xf32>
    %c16_i32 = arith.constant 16 : i32
    %56 = vector.broadcast %c16_i32 : i32 to vector<4x16xi32>
    %57 = arith.select %55, %39, %56 : vector<4x16xi1>, vector<4x16xi32>
    %cst_30 = arith.constant dense<2147483647> : vector<4xi32>
    %58 = vector.multi_reduction <minsi>, %57, %cst_30 [1] : vector<4x16xi32> to vector<4xi32>
    %59 = vector.shape_cast %58 : vector<4xi32> to vector<4x1xi32>
    %60 = vector.broadcast %59 : vector<4x1xi32> to vector<4x16xi32>
    %61 = arith.cmpi eq, %39, %60 : vector<4x16xi32>
    %cst_31 = arith.constant 0.000000e+00 : f32
    %62 = vector.shape_cast %4 : vector<1x16xf32> to vector<1x16xf32>
    %63 = vector.broadcast %62 : vector<1x16xf32> to vector<4x16xf32>
    %64 = vector.broadcast %cst_31 : f32 to vector<4x16xf32>
    %65 = arith.select %61, %63, %64 : vector<4x16xi1>, vector<4x16xf32>
    %cst_32 = arith.constant dense<0.000000e+00> : vector<4x1xf32>
    %66 = tpu.matmul %65, %5, %cst_32 {dimension_numbers = #tpu.dot_dimension_numbers<[1], [0], [0], [1], [0, 0, 1, 1], [], []>} : vector<4x16xf32>, vector<16x1xf32>, vector<4x1xf32> -> vector<4x1xf32>
    %67 = vector.shape_cast %4 : vector<1x16xf32> to vector<1x1x16xf32>
    %cst_33 = arith.constant dense<0xFF800000> : vector<1xf32>
    %68 = vector.multi_reduction <maximumf>, %67, %cst_33 [1, 2] : vector<1x1x16xf32> to vector<1xf32>
    %69 = vector.shape_cast %68 : vector<1xf32> to vector<1x1x1xf32>
    %70 = vector.extract %69[0, 0, 0] : f32 from vector<1x1x1xf32>
    %71 = vector.shape_cast %4 : vector<1x16xf32> to vector<1x1x16xf32>
    %cst_34 = arith.constant dense<0x7F800000> : vector<1xf32>
    %72 = vector.multi_reduction <minimumf>, %71, %cst_34 [1, 2] : vector<1x1x16xf32> to vector<1xf32>
    %73 = vector.shape_cast %72 : vector<1xf32> to vector<1x1x1xf32>
    %74 = vector.extract %73[0, 0, 0] : f32 from vector<1x1x1xf32>
    %75 = arith.subf %70, %74 : f32
    %cst_35 = arith.constant 4.000000e+00 : f32
    %76 = arith.divf %75, %cst_35 : f32
    %77 = vector.broadcast %4 : vector<1x16xf32> to vector<4x16xf32>
    %78 = vector.broadcast %66 : vector<4x1xf32> to vector<4x16xf32>
    %79 = arith.subf %77, %78 : vector<4x16xf32>
    %80 = math.absf %79 : vector<4x16xf32>
    %81 = vector.broadcast %76 : f32 to vector<4x16xf32>
    %82 = arith.cmpf olt, %80, %81 : vector<4x16xf32>
    %83 = arith.andi %49, %82 : vector<4x16xi1>
    %cst_36 = arith.constant dense<true> : vector<4x16xi1>
    %84 = arith.xori %82, %cst_36 : vector<4x16xi1>
    %85 = arith.andi %49, %84 : vector<4x16xi1>
    %86 = arith.extui %83 : vector<4x16xi1> to vector<4x16xi32>
    %87 = arith.sitofp %86 : vector<4x16xi32> to vector<4x16xf32>
    %cst_37 = arith.constant dense<0.000000e+00> : vector<4x1xf32>
    %88 = tpu.matmul %87, %5, %cst_37 {dimension_numbers = #tpu.dot_dimension_numbers<[1], [0], [0], [1], [0, 0, 1, 1], [], []>} : vector<4x16xf32>, vector<16x1xf32>, vector<4x1xf32> -> vector<4x1xf32>
    %89 = arith.extui %85 : vector<4x16xi1> to vector<4x16xi32>
    %90 = arith.sitofp %89 : vector<4x16xi32> to vector<4x16xf32>
    %cst_38 = arith.constant dense<0.000000e+00> : vector<4x1xf32>
    %91 = tpu.matmul %90, %5, %cst_38 {dimension_numbers = #tpu.dot_dimension_numbers<[1], [0], [0], [1], [0, 0, 1, 1], [], []>} : vector<4x16xf32>, vector<16x1xf32>, vector<4x1xf32> -> vector<4x1xf32>
    %cst_39 = arith.constant 0.000000e+00 : f32
    %92 = vector.broadcast %cst_39 : f32 to vector<4x1xf32>
    %93 = arith.cmpf ogt, %88, %92 : vector<4x1xf32>
    %cst_40 = arith.constant 0.000000e+00 : f32
    %94 = vector.broadcast %cst_40 : f32 to vector<4x1xf32>
    %95 = arith.cmpf ogt, %91, %94 : vector<4x1xf32>
    %96 = arith.andi %93, %95 : vector<4x1xi1>
    %97 = arith.extui %96 : vector<4x1xi1> to vector<4x1xi32>
    %98 = arith.sitofp %97 : vector<4x1xi32> to vector<4x1xf32>
    %cst_41 = arith.constant 1.000000e+00 : f32
    %99 = vector.broadcast %cst_41 : f32 to vector<4x16xf32>
    %100 = arith.subf %33, %99 : vector<4x16xf32>
    %cst_42 = arith.constant 2.000000e+00 : f32
    %101 = vector.broadcast %cst_42 : f32 to vector<4x16xf32>
    %102 = arith.mulf %100, %101 : vector<4x16xf32>
    %103 = math.exp %102 : vector<4x16xf32>
    %cst_43 = arith.constant 0.000000e+00 : f32
    %104 = vector.broadcast %cst_43 : f32 to vector<4x16xf32>
    %105 = arith.select %85, %103, %104 : vector<4x16xi1>, vector<4x16xf32>
    %cst_44 = arith.constant dense<0.000000e+00> : vector<4x1xf32>
    %106 = tpu.matmul %105, %5, %cst_44 {dimension_numbers = #tpu.dot_dimension_numbers<[1], [0], [0], [1], [0, 0, 1, 1], [], []>} : vector<4x16xf32>, vector<16x1xf32>, vector<4x1xf32> -> vector<4x1xf32>
    %107 = vector.broadcast %106 : vector<4x1xf32> to vector<4x16xf32>
    %108 = arith.addf %103, %107 : vector<4x16xf32>
    %109 = math.log %108 : vector<4x16xf32>
    %110 = arith.subf %109, %102 : vector<4x16xf32>
    %cst_45 = arith.constant 0.000000e+00 : f32
    %111 = vector.broadcast %cst_45 : f32 to vector<4x16xf32>
    %112 = arith.select %83, %110, %111 : vector<4x16xi1>, vector<4x16xf32>
    %cst_46 = arith.constant dense<0.000000e+00> : vector<4x1xf32>
    %113 = tpu.matmul %112, %5, %cst_46 {dimension_numbers = #tpu.dot_dimension_numbers<[1], [0], [0], [1], [0, 0, 1, 1], [], []>} : vector<4x16xf32>, vector<16x1xf32>, vector<4x1xf32> -> vector<4x1xf32>
    %cst_47 = arith.constant 1.000000e+00 : f32
    %114 = vector.broadcast %cst_47 : f32 to vector<4x1xf32>
    %115 = arith.maximumf %88, %114 : vector<4x1xf32>
    %116 = arith.divf %113, %115 : vector<4x1xf32>
    %117 = vector.shape_cast %98 : vector<4x1xf32> to vector<1x4x1xf32>
    %cst_48 = arith.constant dense<0.000000e+00> : vector<1xf32>
    %118 = vector.multi_reduction <add>, %117, %cst_48 [1, 2] : vector<1x4x1xf32> to vector<1xf32>
    %119 = vector.shape_cast %118 : vector<1xf32> to vector<1x1x1xf32>
    %120 = vector.extract %119[0, 0, 0] : f32 from vector<1x1x1xf32>
    %121 = arith.mulf %116, %98 : vector<4x1xf32>
    %122 = vector.shape_cast %121 : vector<4x1xf32> to vector<1x4x1xf32>
    %cst_49 = arith.constant dense<0.000000e+00> : vector<1xf32>
    %123 = vector.multi_reduction <add>, %122, %cst_49 [1, 2] : vector<1x4x1xf32> to vector<1xf32>
    %124 = vector.shape_cast %123 : vector<1xf32> to vector<1x1x1xf32>
    %125 = vector.extract %124[0, 0, 0] : f32 from vector<1x1x1xf32>
    %cst_50 = arith.constant 1.000000e+00 : f32
    %126 = arith.maximumf %120, %cst_50 : f32
    %127 = arith.divf %125, %126 : f32
    %cst_51 = arith.constant dense<0.000000e+00> : vector<4x4xf32>
    %128 = tpu.matmul %2, %2, %cst_51 {dimension_numbers = #tpu.dot_dimension_numbers<[1], [1], [0], [0], [0, 0, 1, 0], [], []>} : vector<4x64xf32>, vector<4x64xf32>, vector<4x4xf32> -> vector<4x4xf32>
    %129 = vector.broadcast %23 : vector<4x1xf32> to vector<4x4xf32>
    %130 = vector.broadcast %24 : vector<1x4xf32> to vector<4x4xf32>
    %131 = arith.addf %129, %130 : vector<4x4xf32>
    %cst_52 = arith.constant 2.000000e+00 : f32
    %132 = vector.broadcast %cst_52 : f32 to vector<4x4xf32>
    %133 = arith.mulf %132, %128 : vector<4x4xf32>
    %134 = arith.subf %131, %133 : vector<4x4xf32>
    %cst_53 = arith.constant 0.000000e+00 : f32
    %135 = vector.broadcast %cst_53 : f32 to vector<4x4xf32>
    %136 = arith.maximumf %134, %135 : vector<4x4xf32>
    %137 = math.sqrt %136 : vector<4x4xf32>
    %138 = vector.shape_cast %137 : vector<4x4xf32> to vector<1x4x4xf32>
    %cst_54 = arith.constant dense<0.000000e+00> : vector<1xf32>
    %139 = vector.multi_reduction <add>, %138, %cst_54 [1, 2] : vector<1x4x4xf32> to vector<1xf32>
    %140 = vector.shape_cast %139 : vector<1xf32> to vector<1x1x1xf32>
    %141 = vector.extract %140[0, 0, 0] : f32 from vector<1x1x1xf32>
    %cst_55 = arith.constant 5.000000e-01 : f32
    %142 = arith.mulf %cst_55, %141 : f32
    %cst_56 = arith.constant 0.000000e+00 : f32
    %143 = arith.subf %cst_56, %142 : f32
    %cst_57 = arith.constant 6.000000e+00 : f32
    %144 = arith.divf %143, %cst_57 : f32
    %145 = arith.addf %127, %144 : f32
    %c0_58 = arith.constant 0 : index
    %c0_59 = arith.constant 0 : index
    %146 = memref.load %arg8[%c0_58, %c0_59] : memref<1x1xf32, #tpu.memory_space<smem>>
    memref.store %145, %arg8[%c0_58, %c0_59] : memref<1x1xf32, #tpu.memory_space<smem>>
    return
  }
  func.func @transform_0(%arg0: i32) -> (i32, i32) {
    %c0_i32 = arith.constant 0 : i32
    %c0_i32_0 = arith.constant 0 : i32
    %c0_i32_1 = arith.constant 0 : i32
    return %c0_i32, %c0_i32_0 : i32, i32
  }
  func.func @transform_1(%arg0: i32) -> (i32, i32) {
    %c0_i32 = arith.constant 0 : i32
    %c0_i32_0 = arith.constant 0 : i32
    %c0_i32_1 = arith.constant 0 : i32
    return %c0_i32, %c0_i32_0 : i32, i32
  }
  func.func @transform_2(%arg0: i32) -> (i32, i32) {
    %c0_i32 = arith.constant 0 : i32
    %c0_i32_0 = arith.constant 0 : i32
    %c0_i32_1 = arith.constant 0 : i32
    return %c0_i32, %c0_i32_0 : i32, i32
  }
  func.func @transform_3(%arg0: i32) -> (i32, i32) {
    %c0_i32 = arith.constant 0 : i32
    %c0_i32_0 = arith.constant 0 : i32
    %c0_i32_1 = arith.constant 0 : i32
    return %c0_i32, %c0_i32_0 : i32, i32
  }
  func.func @transform_4(%arg0: i32) -> (i32, i32) {
    %c0_i32 = arith.constant 0 : i32
    %c0_i32_0 = arith.constant 0 : i32
    %c0_i32_1 = arith.constant 0 : i32
    return %c0_i32, %c0_i32_0 : i32, i32
  }
  func.func @transform_5(%arg0: i32) -> (i32, i32) {
    %c0_i32 = arith.constant 0 : i32
    %c0_i32_0 = arith.constant 0 : i32
    %c0_i32_1 = arith.constant 0 : i32
    return %c0_i32, %c0_i32_0 : i32, i32
  }
  func.func @transform_6(%arg0: i32) -> (i32, i32) {
    %c0_i32 = arith.constant 0 : i32
    %c0_i32_0 = arith.constant 0 : i32
    %c0_i32_1 = arith.constant 0 : i32
    return %c0_i32, %c0_i32_0 : i32, i32
  }
  func.func @transform_7(%arg0: i32) -> (i32, i32) {
    %c0_i32 = arith.constant 0 : i32
    %c0_i32_0 = arith.constant 0 : i32
    %c0_i32_1 = arith.constant 0 : i32
    return %c0_i32, %c0_i32_0 : i32, i32
  }
}

</mosaic_0001>

<llo_original>
// kernel: peroid_cluster_forward.1
$region0: #{peroid_cluster_forward.1}
  #allocation0 [shape = 'u32[]', space=smem, size = 0x4, offset = 0x4, fixed_abs, tag = 'smem constant byte address 0x4 - core index']
  #allocation1 [shape = 'u32[144,128]{1,0:T(1,128)}', space=vmem, size = 0x12000, scoped, tag = 'internal scratch']
  %s0 = inlined_call_operand.vmem [shape: f32[16,64], index: 0, kind: input, shape index: {}]
  %s1 = inlined_call_operand.vmem [shape: f32[16,64], index: 1, kind: input, shape index: {}]
  %s2 = inlined_call_operand.vmem [shape: f32[128,64], index: 2, kind: input, shape index: {}]
  %s3 = inlined_call_operand.vmem [shape: f32[2,64], index: 3, kind: input, shape index: {}]
  %s4 = inlined_call_operand.vmem [shape: f32[4,64], index: 4, kind: input, shape index: {}]
  %s5 = inlined_call_operand.vmem [shape: f32[16,1], index: 5, kind: input, shape index: {}]
  %s6 = inlined_call_operand.vmem [shape: f32[1,16], index: 6, kind: input, shape index: {}]
  %s7 = inlined_call_operand.hbm [shape: f32[1,1], index: 7, kind: output, shape index: {}]
  %s8 = sld [smem:[#allocation0]]
  $region38: #{peroid_cluster_forward.1} parent=0
    _
  %s10 = ssub.s32 1, %s8
  %s11 = scalar_select 0, %s10, %s8
  $region1: #{peroid_cluster_forward.1} parent=0
    #allocation2 [shape = 'u8[512]{0}', space=smem, size = 0x200, scoped, tag = 'output window, operand 0, single buffered']
    #allocation3 [shape = 's32[1]{0}', space=sflag, size = 0x4, scoped, tag = 'scoped memory for peroid_cluster_forward.1']
    %12 = vsyncpa [#allocation3], 0
    // Predicated region
    $region2: #{peroid_cluster_forward.1} parent=1 // pred_check
      _
    $region3: #{peroid_cluster_forward.1} parent=1 // pred_check_branch
      %14 = sbr.rel (0) target = $region5
    $region4: #{peroid_cluster_forward.1} parent=1 // pred_region
      _
    $region5: #{peroid_cluster_forward.1} parent=1 // pred_fallthru
      _
    // Predicated region
    $region6: #{peroid_cluster_forward.1} parent=1 // pred_check
      _
    $region7: #{peroid_cluster_forward.1} parent=1 // pred_check_branch
      %16 = sbr.rel (0) target = $region9
    $region8: #{peroid_cluster_forward.1} parent=1 // pred_region
      _
    $region9: #{peroid_cluster_forward.1} parent=1 // pred_fallthru
      _
    // Predicated region
    $region10: #{peroid_cluster_forward.1} parent=1 // pred_check
      _
    $region11: #{peroid_cluster_forward.1} parent=1 // pred_check_branch
      %18 = sbr.rel (0) target = $region13
    $region12: #{peroid_cluster_forward.1} parent=1 // pred_region
      _
    $region13: #{peroid_cluster_forward.1} parent=1 // pred_fallthru
      _
    // Predicated region
    $region14: #{peroid_cluster_forward.1} parent=1 // pred_check
      _
    $region15: #{peroid_cluster_forward.1} parent=1 // pred_check_branch
      %20 = sbr.rel (0) target = $region17
    $region16: #{peroid_cluster_forward.1} parent=1 // pred_region
      _
    $region17: #{peroid_cluster_forward.1} parent=1 // pred_fallthru
      _
    // Predicated region
    $region18: #{peroid_cluster_forward.1} parent=1 // pred_check
      _
    $region19: #{peroid_cluster_forward.1} parent=1 // pred_check_branch
      %22 = sbr.rel (0) target = $region21
    $region20: #{peroid_cluster_forward.1} parent=1 // pred_region
      _
    $region21: #{peroid_cluster_forward.1} parent=1 // pred_fallthru
      _
    // Predicated region
    $region22: #{peroid_cluster_forward.1} parent=1 // pred_check
      _
    $region23: #{peroid_cluster_forward.1} parent=1 // pred_check_branch
      %24 = sbr.rel (0) target = $region25
    $region24: #{peroid_cluster_forward.1} parent=1 // pred_region
      _
    $region25: #{peroid_cluster_forward.1} parent=1 // pred_fallthru
      _
    // Predicated region
    $region26: #{peroid_cluster_forward.1} parent=1 // pred_check
      _
    $region27: #{peroid_cluster_forward.1} parent=1 // pred_check_branch
      %26 = sbr.rel (0) target = $region29
    $region28: #{peroid_cluster_forward.1} parent=1 // pred_region
      _
    $region29: #{peroid_cluster_forward.1} parent=1 // pred_fallthru
      _
    %v27 = vld [vmem:[%s0] sm:$0xff]
    %v28 = vld [vmem:[%s0 + $0x8] sm:$0xff]
    %v29 = vld [vmem:[%s1] sm:$0xff]
    %v30 = vld [vmem:[%s1 + $0x8] sm:$0xff]
    %v31 = vld [vmem:[%s4] sm:$0xf]
    %v32 = vld [vmem:[%s5] sm:$0xff]
    %v33 = vld [vmem:[%s5 + $0x8] sm:$0xff]
    %v34 = vld [vmem:[%s6] sm:$0x1]
    %v35 = vld [vmem:[%s2] sm:$0xff]
    %v36 = vld [vmem:[%s2 + $0x8] sm:$0xff]
    %v37 = vld [vmem:[%s2 + $0x10] sm:$0xff]
    %v38 = vld [vmem:[%s2 + $0x18] sm:$0xff]
    %v39 = vld [vmem:[%s2 + $0x20] sm:$0xff]
    %v40 = vld [vmem:[%s2 + $0x28] sm:$0xff]
    %v41 = vld [vmem:[%s2 + $0x30] sm:$0xff]
    %v42 = vld [vmem:[%s2 + $0x38] sm:$0xff]
    %v43 = vld [vmem:[%s2 + $0x40] sm:$0xff]
    %v44 = vld [vmem:[%s2 + $0x48] sm:$0xff]
    %v45 = vld [vmem:[%s2 + $0x50] sm:$0xff]
    %v46 = vld [vmem:[%s2 + $0x58] sm:$0xff]
    %v47 = vld [vmem:[%s2 + $0x60] sm:$0xff]
    %v48 = vld [vmem:[%s2 + $0x68] sm:$0xff]
    %v49 = vld [vmem:[%s2 + $0x70] sm:$0xff]
    %v50 = vld [vmem:[%s2 + $0x78] sm:$0xff]
    %vm51 = vcmask 523264
    %v53 = vsel %vm51, %v29, 0
    %v56 = vsel %vm51, %v30, 0
    %58 = vmatprep.subr.mxu0 0.0
    %59 = vmatpush1.msra.mxu0 %v43
    %60 = vmatprep.subr.mxu0 0.0
    %61 = vmatpush1.msra.mxu0 %v44
    %62 = vmatprep.subr.mxu0 0.0
    %63 = vmatpush1.msra.mxu0 %v45
    %64 = vmatprep.subr.mxu0 0.0
    %65 = vmatpush1.msra.mxu0 %v46
    %66 = vmatprep.subr.mxu0 0.0
    %67 = vmatpush1.msra.mxu0 %v47
    %68 = vmatprep.subr.mxu0 0.0
    %69 = vmatpush1.msra.mxu0 %v48
    %70 = vmatprep.subr.mxu0 0.0
    %71 = vmatpush1.msra.mxu0 %v49
    %72 = vmatprep.subr.mxu0 0.0
    %73 = vmatpush1.msra.mxu0 %v50
    %74 = vmatprep.subr.mxu0 0.0
    %75 = vmatpush1.msra.mxu0 0.0
    %76 = vmatprep.subr.mxu0 0.0
    %77 = vmatpush1.msra.mxu0 0.0
    %78 = vmatprep.subr.mxu0 0.0
    %79 = vmatpush1.msra.mxu0 0.0
    %80 = vmatprep.subr.mxu0 0.0
    %81 = vmatpush1.msra.mxu0 0.0
    %82 = vmatprep.subr.mxu0 0.0
    %83 = vmatpush1.msra.mxu0 0.0
    %84 = vmatprep.subr.mxu0 0.0
    %85 = vmatpush1.msra.mxu0 0.0
    %86 = vmatprep.subr.mxu0 0.0
    %87 = vmatpush1.msra.mxu0 0.0
    %88 = vmatprep.subr.mxu0 0.0
    %89 = vmatpush1.msra.mxu0 0.0
    %90 = vmatprep.subr.mxu0 0.0
    %91 = vmatpush1.msra.mxu0 0.0
    %92 = vmatprep.subr.mxu0 0.0
    %93 = vmatpush1.msra.mxu0 0.0
    %94 = vmatprep.subr.mxu0 0.0
    %95 = vmatpush1.msra.mxu0 0.0
    %96 = vmatprep.subr.mxu0 0.0
    %97 = vmatpush1.msra.mxu0 0.0
    %98 = vmatprep.subr.mxu0 0.0
    %99 = vmatpush1.msra.mxu0 0.0
    %100 = vmatprep.subr.mxu0 0.0
    %101 = vmatpush1.msra.mxu0 0.0
    %102 = vmatprep.subr.mxu0 0.0
    %103 = vmatpush1.msra.mxu0 0.0
    %104 = vmatprep.subr.mxu0 0.0
    %105 = vmatpush1.msra.mxu0 0.0
    %106 = vmatprep.subr.mxu0 0.0
    %107 = vmatpush1.msra.mxu0 0.0
    %108 = vmatprep.subr.mxu0 0.0
    %109 = vmatpush1.msra.mxu0 0.0
    %110 = vmatprep.subr.mxu0 0.0
    %111 = vmatpush1.msra.mxu0 0.0
    %112 = vmatprep.subr.mxu0 0.0
    %113 = vmatpush1.msra.mxu0 0.0
    %114 = vmatprep.subr.mxu0 0.0
    %115 = vmatpush1.msra.mxu0 0.0
    %116 = vmatprep.subr.mxu0 0.0
    %117 = vmatpush1.msra.mxu0 0.0
    %118 = vmatprep.subr.mxu0 0.0
    %119 = vmatpush1.msra.mxu0 0.0
    %120 = vmatprep.subr.mxu0 0.0
    %121 = vmatpush1.msra.mxu0 0.0
    %122 = vmatprep.mubr.f32.mxu0 0.0
    %123 = vmatmul.mubr.f32.gmra.mrb[0].mxu0 %v53
    %v124 = vpop.f32.mrb[0].mxu0
    %v125 = vadd.f32 0.0, %v124
    %v126 = vpop.f32.mrb[0].mxu0
    %127 = vmatprep.mubr.f32.mxu0 0.0
    %128 = vmatmul.mubr.f32.gmra.mrb[0].mxu0 %v56
    %v129 = vpop.f32.mrb[0].mxu0
    %v130 = vadd.f32 0.0, %v129
    %v131 = vpop.f32.mrb[0].mxu0
    %132 = vdwg.mxu0
    %v134 = vsel %vm51, %v27, 0
    %v137 = vsel %vm51, %v28, 0
    %139 = vmatprep.subr.mxu0 0.0
    %140 = vmatpush1.msra.mxu0 %v35
    %141 = vmatprep.subr.mxu0 0.0
    %142 = vmatpush1.msra.mxu0 %v36
    %143 = vmatprep.subr.mxu0 0.0
    %144 = vmatpush1.msra.mxu0 %v37
    %145 = vmatprep.subr.mxu0 0.0
    %146 = vmatpush1.msra.mxu0 %v38
    %147 = vmatprep.subr.mxu0 0.0
    %148 = vmatpush1.msra.mxu0 %v39
    %149 = vmatprep.subr.mxu0 0.0
    %150 = vmatpush1.msra.mxu0 %v40
    %151 = vmatprep.subr.mxu0 0.0
    %152 = vmatpush1.msra.mxu0 %v41
    %153 = vmatprep.subr.mxu0 0.0
    %154 = vmatpush1.msra.mxu0 %v42
    %155 = vmatprep.subr.mxu0 0.0
    %156 = vmatpush1.msra.mxu0 0.0
    %157 = vmatprep.subr.mxu0 0.0
    %158 = vmatpush1.msra.mxu0 0.0
    %159 = vmatprep.subr.mxu0 0.0
    %160 = vmatpush1.msra.mxu0 0.0
    %161 = vmatprep.subr.mxu0 0.0
    %162 = vmatpush1.msra.mxu0 0.0
    %163 = vmatprep.subr.mxu0 0.0
    %164 = vmatpush1.msra.mxu0 0.0
    %165 = vmatprep.subr.mxu0 0.0
    %166 = vmatpush1.msra.mxu0 0.0
    %167 = vmatprep.subr.mxu0 0.0
    %168 = vmatpush1.msra.mxu0 0.0
    %169 = vmatprep.subr.mxu0 0.0
    %170 = vmatpush1.msra.mxu0 0.0
    %171 = vmatprep.subr.mxu0 0.0
    %172 = vmatpush1.msra.mxu0 0.0
    %173 = vmatprep.subr.mxu0 0.0
    %174 = vmatpush1.msra.mxu0 0.0
    %175 = vmatprep.subr.mxu0 0.0
    %176 = vmatpush1.msra.mxu0 0.0
    %177 = vmatprep.subr.mxu0 0.0
    %178 = vmatpush1.msra.mxu0 0.0
    %179 = vmatprep.subr.mxu0 0.0
    %180 = vmatpush1.msra.mxu0 0.0
    %181 = vmatprep.subr.mxu0 0.0
    %182 = vmatpush1.msra.mxu0 0.0
    %183 = vmatprep.subr.mxu0 0.0
    %184 = vmatpush1.msra.mxu0 0.0
    %185 = vmatprep.subr.mxu0 0.0
    %186 = vmatpush1.msra.mxu0 0.0
    %187 = vmatprep.subr.mxu0 0.0
    %188 = vmatpush1.msra.mxu0 0.0
    %189 = vmatprep.subr.mxu0 0.0
    %190 = vmatpush1.msra.mxu0 0.0
    %191 = vmatprep.subr.mxu0 0.0
    %192 = vmatpush1.msra.mxu0 0.0
    %193 = vmatprep.subr.mxu0 0.0
    %194 = vmatpush1.msra.mxu0 0.0
    %195 = vmatprep.subr.mxu0 0.0
    %196 = vmatpush1.msra.mxu0 0.0
    %197 = vmatprep.subr.mxu0 0.0
    %198 = vmatpush1.msra.mxu0 0.0
    %199 = vmatprep.subr.mxu0 0.0
    %200 = vmatpush1.msra.mxu0 0.0
    %201 = vmatprep.subr.mxu0 0.0
    %202 = vmatpush1.msra.mxu0 0.0
    %203 = vmatprep.mubr.f32.mxu0 0.0
    %204 = vmatmul.mubr.f32.gmra.mrb[0].mxu0 %v134
    %v205 = vpop.f32.mrb[0].mxu0
    %v206 = vadd.f32 %v125, %v205
    %v207 = vpop.f32.mrb[0].mxu0
    %208 = vmatprep.mubr.f32.mxu0 0.0
    %209 = vmatmul.mubr.f32.gmra.mrb[0].mxu0 %v137
    %v210 = vpop.f32.mrb[0].mxu0
    %v211 = vadd.f32 %v130, %v210
    %v212 = vpop.f32.mrb[0].mxu0
    %213 = vdwg.mxu0
    %v214 = vld [vmem:[%s3] sm:$0x1]
    %216 = vset.pattern.permute.xlu0 0
    %217 = vperm.xlu0 %216, %v32
    %v218 = vpop.permute.xlu0 %217
    %221 = vset.pattern.permute.xlu0 0
    %222 = vperm.xlu0 %221, %v33
    %v223 = vpop.permute.xlu0 %222
    %v225 = vlaneseq
    %v226 = vshrl.u32 %v225, 7
    %v227 = vsub.s32 0, %v226
    %v228 = vrot.slane %v214, %v227
    %v229 = vmul.f32 %v218, %v228
    %v230 = vmul.f32 %v223, %v228
    %v231 = vadd.f32 %v206, %v229
    %v232 = vadd.f32 %v211, %v230
    %v233 = vld [vmem:[%s3 + $0x1] sm:$0x1]
    %v234 = vlaneseq
    %v235 = vshrl.u32 %v234, 7
    %v236 = vsub.s32 0, %v235
    %v237 = vrot.slane %v233, %v236
    %v238 = vadd.f32 %v231, %v237
    %v239 = vadd.f32 %v232, %v237
    %v241 = vsel %vm51, %v31, 0
    %v244 = vsel %vm51, %v238, 0
    %v247 = vsel %vm51, %v239, 0
    %249 = vmatprep.subr.mxu0 0.0
    %250 = vmatpush1.xpose.msra.mxu0 %v244
    %251 = vmatprep.subr.mxu0 0.0
    %252 = vmatpush1.xpose.msra.mxu0 %v247
    %253 = vmatprep.subr.mxu0 0.0
    %254 = vmatpush1.xpose.msra.mxu0 0.0
    %255 = vmatprep.subr.mxu0 0.0
    %256 = vmatpush1.xpose.msra.mxu0 0.0
    %257 = vmatprep.subr.mxu0 0.0
    %258 = vmatpush1.xpose.msra.mxu0 0.0
    %259 = vmatprep.subr.mxu0 0.0
    %260 = vmatpush1.xpose.msra.mxu0 0.0
    %261 = vmatprep.subr.mxu0 0.0
    %262 = vmatpush1.xpose.msra.mxu0 0.0
    %263 = vmatprep.subr.mxu0 0.0
    %264 = vmatpush1.xpose.msra.mxu0 0.0
    %265 = vmatprep.subr.mxu0 0.0
    %266 = vmatpush1.xpose.msra.mxu0 0.0
    %267 = vmatprep.subr.mxu0 0.0
    %268 = vmatpush1.xpose.msra.mxu0 0.0
    %269 = vmatprep.subr.mxu0 0.0
    %270 = vmatpush1.xpose.msra.mxu0 0.0
    %271 = vmatprep.subr.mxu0 0.0
    %272 = vmatpush1.xpose.msra.mxu0 0.0
    %273 = vmatprep.subr.mxu0 0.0
    %274 = vmatpush1.xpose.msra.mxu0 0.0
    %275 = vmatprep.subr.mxu0 0.0
    %276 = vmatpush1.xpose.msra.mxu0 0.0
    %277 = vmatprep.subr.mxu0 0.0
    %278 = vmatpush1.xpose.msra.mxu0 0.0
    %279 = vmatprep.subr.mxu0 0.0
    %280 = vmatpush1.xpose.msra.mxu0 0.0
    %281 = vmatprep.subr.mxu0 0.0
    %282 = vmatpush1.xpose.msra.mxu0 0.0
    %283 = vmatprep.subr.mxu0 0.0
    %284 = vmatpush1.xpose.msra.mxu0 0.0
    %285 = vmatprep.subr.mxu0 0.0
    %286 = vmatpush1.xpose.msra.mxu0 0.0
    %287 = vmatprep.subr.mxu0 0.0
    %288 = vmatpush1.xpose.msra.mxu0 0.0
    %289 = vmatprep.subr.mxu0 0.0
    %290 = vmatpush1.xpose.msra.mxu0 0.0
    %291 = vmatprep.subr.mxu0 0.0
    %292 = vmatpush1.xpose.msra.mxu0 0.0
    %293 = vmatprep.subr.mxu0 0.0
    %294 = vmatpush1.xpose.msra.mxu0 0.0
    %295 = vmatprep.subr.mxu0 0.0
    %296 = vmatpush1.xpose.msra.mxu0 0.0
    %297 = vmatprep.subr.mxu0 0.0
    %298 = vmatpush1.xpose.msra.mxu0 0.0
    %299 = vmatprep.subr.mxu0 0.0
    %300 = vmatpush1.xpose.msra.mxu0 0.0
    %301 = vmatprep.subr.mxu0 0.0
    %302 = vmatpush1.xpose.msra.mxu0 0.0
    %303 = vmatprep.subr.mxu0 0.0
    %304 = vmatpush1.xpose.msra.mxu0 0.0
    %305 = vmatprep.subr.mxu0 0.0
    %306 = vmatpush1.xpose.msra.mxu0 0.0
    %307 = vmatprep.subr.mxu0 0.0
    %308 = vmatpush1.xpose.msra.mxu0 0.0
    %309 = vmatprep.subr.mxu0 0.0
    %310 = vmatpush1.xpose.msra.mxu0 0.0
    %311 = vmatprep.subr.mxu0 0.0
    %312 = vmatpush1.xpose.msra.mxu0 0.0
    %313 = vmatprep.mubr.f32.mxu0 0.0
    %314 = vmatmul.mubr.f32.gmra.mrb[0].mxu0 %v241
    %v315 = vpop.f32.mrb[0].mxu0
    %v316 = vadd.f32 0.0, %v315
    %v317 = vpop.f32.mrb[0].mxu0
    %318 = vdwg.mxu0
    %v319 = vmul.f32 %v31, %v31
    %v321 = vsel %vm51, %v319, 0
    %323 = vmatprep.subr.mxu0 0.0
    %324 = vmatpush1.msra.mxu0 1.0
    %325 = vmatprep.subr.mxu0 0.0
    %326 = vmatpush1.msra.mxu0 1.0
    %327 = vmatprep.subr.mxu0 0.0
    %328 = vmatpush1.msra.mxu0 1.0
    %329 = vmatprep.subr.mxu0 0.0
    %330 = vmatpush1.msra.mxu0 1.0
    %331 = vmatprep.subr.mxu0 0.0
    %332 = vmatpush1.msra.mxu0 1.0
    %333 = vmatprep.subr.mxu0 0.0
    %334 = vmatpush1.msra.mxu0 1.0
    %335 = vmatprep.subr.mxu0 0.0
    %336 = vmatpush1.msra.mxu0 1.0
    %337 = vmatprep.subr.mxu0 0.0
    %338 = vmatpush1.msra.mxu0 1.0
    %339 = vmatprep.subr.mxu0 0.0
    %340 = vmatpush1.msra.mxu0 0.0
    %341 = vmatprep.subr.mxu0 0.0
    %342 = vmatpush1.msra.mxu0 0.0
    %343 = vmatprep.subr.mxu0 0.0
    %344 = vmatpush1.msra.mxu0 0.0
    %345 = vmatprep.subr.mxu0 0.0
    %346 = vmatpush1.msra.mxu0 0.0
    %347 = vmatprep.subr.mxu0 0.0
    %348 = vmatpush1.msra.mxu0 0.0
    %349 = vmatprep.subr.mxu0 0.0
    %350 = vmatpush1.msra.mxu0 0.0
    %351 = vmatprep.subr.mxu0 0.0
    %352 = vmatpush1.msra.mxu0 0.0
    %353 = vmatprep.subr.mxu0 0.0
    %354 = vmatpush1.msra.mxu0 0.0
    %355 = vmatprep.subr.mxu0 0.0
    %356 = vmatpush1.msra.mxu0 0.0
    %357 = vmatprep.subr.mxu0 0.0
    %358 = vmatpush1.msra.mxu0 0.0
    %359 = vmatprep.subr.mxu0 0.0
    %360 = vmatpush1.msra.mxu0 0.0
    %361 = vmatprep.subr.mxu0 0.0
    %362 = vmatpush1.msra.mxu0 0.0
    %363 = vmatprep.subr.mxu0 0.0
    %364 = vmatpush1.msra.mxu0 0.0
    %365 = vmatprep.subr.mxu0 0.0
    %366 = vmatpush1.msra.mxu0 0.0
    %367 = vmatprep.subr.mxu0 0.0
    %368 = vmatpush1.msra.mxu0 0.0
    %369 = vmatprep.subr.mxu0 0.0
    %370 = vmatpush1.msra.mxu0 0.0
    %371 = vmatprep.subr.mxu0 0.0
    %372 = vmatpush1.msra.mxu0 0.0
    %373 = vmatprep.subr.mxu0 0.0
    %374 = vmatpush1.msra.mxu0 0.0
    %375 = vmatprep.subr.mxu0 0.0
    %376 = vmatpush1.msra.mxu0 0.0
    %377 = vmatprep.subr.mxu0 0.0
    %378 = vmatpush1.msra.mxu0 0.0
    %379 = vmatprep.subr.mxu0 0.0
    %380 = vmatpush1.msra.mxu0 0.0
    %381 = vmatprep.subr.mxu0 0.0
    %382 = vmatpush1.msra.mxu0 0.0
    %383 = vmatprep.subr.mxu0 0.0
    %384 = vmatpush1.msra.mxu0 0.0
    %385 = vmatprep.subr.mxu0 0.0
    %386 = vmatpush1.msra.mxu0 0.0
    %387 = vmatprep.mubr.f32.mxu0 0.0
    %388 = vmatmul.mubr.f32.gmra.mrb[0].mxu0 %v321
    %v389 = vpop.f32.mrb[0].mxu0
    %v390 = vadd.f32 0.0, %v389
    %v391 = vpop.f32.mrb[0].mxu0
    %392 = vdwg.mxu0
    %v394 = vsel %vm51, 1.0, 0
    %396 = vmatprep.subr.mxu0 0.0
    %397 = vmatpush1.xpose.msra.mxu0 %v321
    %398 = vmatprep.subr.mxu0 0.0
    %399 = vmatpush1.xpose.msra.mxu0 0.0
    %400 = vmatprep.subr.mxu0 0.0
    %401 = vmatpush1.xpose.msra.mxu0 0.0
    %402 = vmatprep.subr.mxu0 0.0
    %403 = vmatpush1.xpose.msra.mxu0 0.0
    %404 = vmatprep.subr.mxu0 0.0
    %405 = vmatpush1.xpose.msra.mxu0 0.0
    %406 = vmatprep.subr.mxu0 0.0
    %407 = vmatpush1.xpose.msra.mxu0 0.0
    %408 = vmatprep.subr.mxu0 0.0
    %409 = vmatpush1.xpose.msra.mxu0 0.0
    %410 = vmatprep.subr.mxu0 0.0
    %411 = vmatpush1.xpose.msra.mxu0 0.0
    %412 = vmatprep.subr.mxu0 0.0
    %413 = vmatpush1.xpose.msra.mxu0 0.0
    %414 = vmatprep.subr.mxu0 0.0
    %415 = vmatpush1.xpose.msra.mxu0 0.0
    %416 = vmatprep.subr.mxu0 0.0
    %417 = vmatpush1.xpose.msra.mxu0 0.0
    %418 = vmatprep.subr.mxu0 0.0
    %419 = vmatpush1.xpose.msra.mxu0 0.0
    %420 = vmatprep.subr.mxu0 0.0
    %421 = vmatpush1.xpose.msra.mxu0 0.0
    %422 = vmatprep.subr.mxu0 0.0
    %423 = vmatpush1.xpose.msra.mxu0 0.0
    %424 = vmatprep.subr.mxu0 0.0
    %425 = vmatpush1.xpose.msra.mxu0 0.0
    %426 = vmatprep.subr.mxu0 0.0
    %427 = vmatpush1.xpose.msra.mxu0 0.0
    %428 = vmatprep.subr.mxu0 0.0
    %429 = vmatpush1.xpose.msra.mxu0 0.0
    %430 = vmatprep.subr.mxu0 0.0
    %431 = vmatpush1.xpose.msra.mxu0 0.0
    %432 = vmatprep.subr.mxu0 0.0
    %433 = vmatpush1.xpose.msra.mxu0 0.0
    %434 = vmatprep.subr.mxu0 0.0
    %435 = vmatpush1.xpose.msra.mxu0 0.0
    %436 = vmatprep.subr.mxu0 0.0
    %437 = vmatpush1.xpose.msra.mxu0 0.0
    %438 = vmatprep.subr.mxu0 0.0
    %439 = vmatpush1.xpose.msra.mxu0 0.0
    %440 = vmatprep.subr.mxu0 0.0
    %441 = vmatpush1.xpose.msra.mxu0 0.0
    %442 = vmatprep.subr.mxu0 0.0
    %443 = vmatpush1.xpose.msra.mxu0 0.0
    %444 = vmatprep.subr.mxu0 0.0
    %445 = vmatpush1.xpose.msra.mxu0 0.0
    %446 = vmatprep.subr.mxu0 0.0
    %447 = vmatpush1.xpose.msra.mxu0 0.0
    %448 = vmatprep.subr.mxu0 0.0
    %449 = vmatpush1.xpose.msra.mxu0 0.0
    %450 = vmatprep.subr.mxu0 0.0
    %451 = vmatpush1.xpose.msra.mxu0 0.0
    %452 = vmatprep.subr.mxu0 0.0
    %453 = vmatpush1.xpose.msra.mxu0 0.0
    %454 = vmatprep.subr.mxu0 0.0
    %455 = vmatpush1.xpose.msra.mxu0 0.0
    %456 = vmatprep.subr.mxu0 0.0
    %457 = vmatpush1.xpose.msra.mxu0 0.0
    %458 = vmatprep.subr.mxu0 0.0
    %459 = vmatpush1.xpose.msra.mxu0 0.0
    %460 = vmatprep.mubr.f32.mxu0 0.0
    %461 = vmatmul.mubr.f32.gmra.mrb[0].mxu0 %v394
    %v462 = vpop.f32.mrb[0].mxu0
    %v463 = vadd.f32 0.0, %v462
    %v464 = vpop.f32.mrb[0].mxu0
    %465 = vdwg.mxu0
    %v466 = vmul.f32 %v238, %v238
    %v467 = vmul.f32 %v239, %v239
    %v469 = vsel %vm51, %v466, 0
    %v472 = vsel %vm51, %v467, 0
    %474 = vmatprep.subr.mxu0 0.0
    %475 = vmatpush1.xpose.msra.mxu0 %v469
    %476 = vmatprep.subr.mxu0 0.0
    %477 = vmatpush1.xpose.msra.mxu0 %v472
    %478 = vmatprep.subr.mxu0 0.0
    %479 = vmatpush1.xpose.msra.mxu0 0.0
    %480 = vmatprep.subr.mxu0 0.0
    %481 = vmatpush1.xpose.msra.mxu0 0.0
    %482 = vmatprep.subr.mxu0 0.0
    %483 = vmatpush1.xpose.msra.mxu0 0.0
    %484 = vmatprep.subr.mxu0 0.0
    %485 = vmatpush1.xpose.msra.mxu0 0.0
    %486 = vmatprep.subr.mxu0 0.0
    %487 = vmatpush1.xpose.msra.mxu0 0.0
    %488 = vmatprep.subr.mxu0 0.0
    %489 = vmatpush1.xpose.msra.mxu0 0.0
    %490 = vmatprep.subr.mxu0 0.0
    %491 = vmatpush1.xpose.msra.mxu0 0.0
    %492 = vmatprep.subr.mxu0 0.0
    %493 = vmatpush1.xpose.msra.mxu0 0.0
    %494 = vmatprep.subr.mxu0 0.0
    %495 = vmatpush1.xpose.msra.mxu0 0.0
    %496 = vmatprep.subr.mxu0 0.0
    %497 = vmatpush1.xpose.msra.mxu0 0.0
    %498 = vmatprep.subr.mxu0 0.0
    %499 = vmatpush1.xpose.msra.mxu0 0.0
    %500 = vmatprep.subr.mxu0 0.0
    %501 = vmatpush1.xpose.msra.mxu0 0.0
    %502 = vmatprep.subr.mxu0 0.0
    %503 = vmatpush1.xpose.msra.mxu0 0.0
    %504 = vmatprep.subr.mxu0 0.0
    %505 = vmatpush1.xpose.msra.mxu0 0.0
    %506 = vmatprep.subr.mxu0 0.0
    %507 = vmatpush1.xpose.msra.mxu0 0.0
    %508 = vmatprep.subr.mxu0 0.0
    %509 = vmatpush1.xpose.msra.mxu0 0.0
    %510 = vmatprep.subr.mxu0 0.0
    %511 = vmatpush1.xpose.msra.mxu0 0.0
    %512 = vmatprep.subr.mxu0 0.0
    %513 = vmatpush1.xpose.msra.mxu0 0.0
    %514 = vmatprep.subr.mxu0 0.0
    %515 = vmatpush1.xpose.msra.mxu0 0.0
    %516 = vmatprep.subr.mxu0 0.0
    %517 = vmatpush1.xpose.msra.mxu0 0.0
    %518 = vmatprep.subr.mxu0 0.0
    %519 = vmatpush1.xpose.msra.mxu0 0.0
    %520 = vmatprep.subr.mxu0 0.0
    %521 = vmatpush1.xpose.msra.mxu0 0.0
    %522 = vmatprep.subr.mxu0 0.0
    %523 = vmatpush1.xpose.msra.mxu0 0.0
    %524 = vmatprep.subr.mxu0 0.0
    %525 = vmatpush1.xpose.msra.mxu0 0.0
    %526 = vmatprep.subr.mxu0 0.0
    %527 = vmatpush1.xpose.msra.mxu0 0.0
    %528 = vmatprep.subr.mxu0 0.0
    %529 = vmatpush1.xpose.msra.mxu0 0.0
    %530 = vmatprep.subr.mxu0 0.0
    %531 = vmatpush1.xpose.msra.mxu0 0.0
    %532 = vmatprep.subr.mxu0 0.0
    %533 = vmatpush1.xpose.msra.mxu0 0.0
    %534 = vmatprep.subr.mxu0 0.0
    %535 = vmatpush1.xpose.msra.mxu0 0.0
    %536 = vmatprep.subr.mxu0 0.0
    %537 = vmatpush1.xpose.msra.mxu0 0.0
    %538 = vmatprep.mubr.f32.mxu0 0.0
    %539 = vmatmul.mubr.f32.gmra.mrb[0].mxu0 %v394
    %v540 = vpop.f32.mrb[0].mxu0
    %v541 = vadd.f32 0.0, %v540
    %v542 = vpop.f32.mrb[0].mxu0
    %543 = vdwg.mxu0
    %545 = vset.pattern.permute.xlu0 0
    %546 = vperm.xlu0 %545, %v390
    %v547 = vpop.permute.xlu0 %546
    %v549 = vlaneseq
    %v550 = vshrl.u32 %v549, 7
    %v551 = vsub.s32 0, %v550
    %v552 = vrot.slane %v541, %v551
    %v553 = vmul.f32 %v547, %v552
    %v554 = vmax.f32 %v553, 1e-16
    %v555 = vrsqrt.pop %v554
    %v556 = vmul.f32 %v316, %v555
    %v557 = vmul.f32 %v556, 0.5
    %v558 = vadd.f32 %v557, 0.5
    %v559 = vlaneseq
    %v560 = vshrl.u32 %v559, 7
    %v561 = vlaneseq
    %v562 = vand.u32 %v561, 127
    %vm563 = vcmask 125952
    %v564 = vsel %vm563, %v558, -inf
    %v565 = vrot.slane %v564, 4
    %v566 = vmax.f32 %v564, %v565
    %v567 = vrot.slane %v566, 2
    %v568 = vmax.f32 %v566, %v567
    %v569 = vrot.slane %v568, 1
    %v570 = vmax.f32 %v568, %v569
    %vm571 = vcmp.ge.f32.partialorder %v558, %v570
    %v572 = vsel %vm571, %v560, 4
    %v573 = vsel %vm563, %v572, 2147483647
    %v574 = vrot.slane %v573, 4
    %vm575 = vcmp.lt.s32.totalorder %v573, %v574
    %v576 = vsel %vm575, %v573, %v574
    %v577 = vrot.slane %v576, 2
    %vm578 = vcmp.lt.s32.totalorder %v576, %v577
    %v579 = vsel %vm578, %v576, %v577
    %v580 = vrot.slane %v579, 1
    %vm581 = vcmp.lt.s32.totalorder %v579, %v580
    %v582 = vsel %vm581, %v579, %v580
    %vm583 = vcmp.eq.s32.totalorder %v560, %v582
    %v584 = vsel %vm583, %v558, -inf
    %v585 = vsel %vm563, %v584, -inf
    %586 = vmax.xlane.f32.xlu0 %v585
    %v587 = vpop.xlane.xlu0 %586
    %vm588 = vcmp.ge.f32.partialorder %v584, %v587
    %v589 = vsel %vm588, %v562, 16
    %v590 = vsel %vm563, %v589, 2147483647
    %v591 = vand.u32 %v590, 65535
    %v592 = vshra.s32 %v590, 16
    %v593 = vcvt.s32.f32 %v591
    %v594 = vcvt.s32.f32 %v592
    %595 = vmin.xlane.f32.xlu0 %v594
    %v596 = vpop.xlane.xlu0 %595
    %vm597 = vcmp.eq.f32.partialorder %v594, %v596
    %v598 = vsel %vm597, %v593, inf
    %599 = vmin.xlane.f32.xlu0 %v598
    %v600 = vpop.xlane.xlu0 %599
    %v601 = vcvt.f32.s32 %v600
    %v602 = vcvt.f32.s32 %v596
    %v603 = vshll.u32 %v602, 16
    %v604 = vadd.s32 %v603, %v601
    %vm605 = vcmp.eq.s32.totalorder %v562, %v604
    %v607 = vlaneseq
    %v608 = vshrl.u32 %v607, 7
    %v609 = vsub.s32 0, %v608
    %v610 = vrot.slane %v34, %v609
    %v612 = vsel %vm605, %v610, 0.0
    %vm613 = vcmask 130048
    %v615 = vsel %vm613, %v612, 0
    %617 = vmatprep.subr.mxu0 0.0
    %618 = vmatpush1.msra.mxu0 1.0
    %619 = vmatprep.subr.mxu0 0.0
    %620 = vmatpush1.msra.mxu0 1.0
    %621 = vmatprep.subr.mxu0 0.0
    %622 = vmatpush1.msra.mxu0 0.0
    %623 = vmatprep.subr.mxu0 0.0
    %624 = vmatpush1.msra.mxu0 0.0
    %625 = vmatprep.subr.mxu0 0.0
    %626 = vmatpush1.msra.mxu0 0.0
    %627 = vmatprep.subr.mxu0 0.0
    %628 = vmatpush1.msra.mxu0 0.0
    %629 = vmatprep.subr.mxu0 0.0
    %630 = vmatpush1.msra.mxu0 0.0
    %631 = vmatprep.subr.mxu0 0.0
    %632 = vmatpush1.msra.mxu0 0.0
    %633 = vmatprep.subr.mxu0 0.0
    %634 = vmatpush1.msra.mxu0 0.0
    %635 = vmatprep.subr.mxu0 0.0
    %636 = vmatpush1.msra.mxu0 0.0
    %637 = vmatprep.subr.mxu0 0.0
    %638 = vmatpush1.msra.mxu0 0.0
    %639 = vmatprep.subr.mxu0 0.0
    %640 = vmatpush1.msra.mxu0 0.0
    %641 = vmatprep.subr.mxu0 0.0
    %642 = vmatpush1.msra.mxu0 0.0
    %643 = vmatprep.subr.mxu0 0.0
    %644 = vmatpush1.msra.mxu0 0.0
    %645 = vmatprep.subr.mxu0 0.0
    %646 = vmatpush1.msra.mxu0 0.0
    %647 = vmatprep.subr.mxu0 0.0
    %648 = vmatpush1.msra.mxu0 0.0
    %649 = vmatprep.subr.mxu0 0.0
    %650 = vmatpush1.msra.mxu0 0.0
    %651 = vmatprep.subr.mxu0 0.0
    %652 = vmatpush1.msra.mxu0 0.0
    %653 = vmatprep.subr.mxu0 0.0
    %654 = vmatpush1.msra.mxu0 0.0
    %655 = vmatprep.subr.mxu0 0.0
    %656 = vmatpush1.msra.mxu0 0.0
    %657 = vmatprep.subr.mxu0 0.0
    %658 = vmatpush1.msra.mxu0 0.0
    %659 = vmatprep.subr.mxu0 0.0
    %660 = vmatpush1.msra.mxu0 0.0
    %661 = vmatprep.subr.mxu0 0.0
    %662 = vmatpush1.msra.mxu0 0.0
    %663 = vmatprep.subr.mxu0 0.0
    %664 = vmatpush1.msra.mxu0 0.0
    %665 = vmatprep.subr.mxu0 0.0
    %666 = vmatpush1.msra.mxu0 0.0
    %667 = vmatprep.subr.mxu0 0.0
    %668 = vmatpush1.msra.mxu0 0.0
    %669 = vmatprep.subr.mxu0 0.0
    %670 = vmatpush1.msra.mxu0 0.0
    %671 = vmatprep.subr.mxu0 0.0
    %672 = vmatpush1.msra.mxu0 0.0
    %673 = vmatprep.subr.mxu0 0.0
    %674 = vmatpush1.msra.mxu0 0.0
    %675 = vmatprep.subr.mxu0 0.0
    %676 = vmatpush1.msra.mxu0 0.0
    %677 = vmatprep.subr.mxu0 0.0
    %678 = vmatpush1.msra.mxu0 0.0
    %679 = vmatprep.subr.mxu0 0.0
    %680 = vmatpush1.msra.mxu0 0.0
    %681 = vmatprep.mubr.f32.mxu0 0.0
    %682 = vmatmul.mubr.f32.gmra.mrb[0].mxu0 %v615
    %v683 = vpop.f32.mrb[0].mxu0
    %v684 = vadd.f32 0.0, %v683
    %v685 = vpop.f32.mrb[0].mxu0
    %686 = vdwg.mxu0
    %vm687 = vcmask 122880
    %v688 = vsel %vm687, %v34, -inf
    %689 = vmax.xlane.f32.xlu0 %v688
    %v690 = vpop.xlane.xlu0 %689
    %v691 = vrot.slane %v690, 4
    %v692 = vmax.f32 %v690, %v691
    %v693 = vrot.slane %v692, 2
    %v694 = vmax.f32 %v692, %v693
    %v695 = vrot.slane %v694, 1
    %v696 = vmax.f32 %v694, %v695
    %s697 = vtos %v696
    %v698 = vsel %vm687, %v34, inf
    %699 = vmin.xlane.f32.xlu0 %v698
    %v700 = vpop.xlane.xlu0 %699
    %v701 = vrot.slane %v700, 4
    %v702 = vmin.f32 %v700, %v701
    %v703 = vrot.slane %v702, 2
    %v704 = vmin.f32 %v702, %v703
    %v705 = vrot.slane %v704, 1
    %v706 = vmin.f32 %v704, %v705
    %s707 = vtos %v706
    %s708 = ssub.f32 %s697, %s707
    %v709 = vrcp.pop 4.0
    %s710 = vtos %v709
    %s711 = smul.f32 %s708, %s710
    %713 = vset.pattern.permute.xlu0 0
    %714 = vperm.xlu0 %713, %v684
    %v715 = vpop.permute.xlu0 %714
    %v717 = vsub.f32 %v610, %v715
    %v718 = vand.u32 2147483647, %v717
    %v719 = vstv %s711
    %vm720 = vcmp.lt.f32.partialorder %v718, %v719
    %vm721 = vmand %vm583, %vm720
    %vm722 = vmxor %vm720, 1
    %vm723 = vmand %vm583, %vm722
    %v724 = vsel %vm721, 1, 0
    %v725 = vcvt.s32.f32 %v724
    %v727 = vsel %vm613, %v725, 0
    %729 = vmatprep.subr.mxu0 0.0
    %730 = vmatpush1.msra.mxu0 1.0
    %731 = vmatprep.subr.mxu0 0.0
    %732 = vmatpush1.msra.mxu0 1.0
    %733 = vmatprep.subr.mxu0 0.0
    %734 = vmatpush1.msra.mxu0 0.0
    %735 = vmatprep.subr.mxu0 0.0
    %736 = vmatpush1.msra.mxu0 0.0
    %737 = vmatprep.subr.mxu0 0.0
    %738 = vmatpush1.msra.mxu0 0.0
    %739 = vmatprep.subr.mxu0 0.0
    %740 = vmatpush1.msra.mxu0 0.0
    %741 = vmatprep.subr.mxu0 0.0
    %742 = vmatpush1.msra.mxu0 0.0
    %743 = vmatprep.subr.mxu0 0.0
    %744 = vmatpush1.msra.mxu0 0.0
    %745 = vmatprep.subr.mxu0 0.0
    %746 = vmatpush1.msra.mxu0 0.0
    %747 = vmatprep.subr.mxu0 0.0
    %748 = vmatpush1.msra.mxu0 0.0
    %749 = vmatprep.subr.mxu0 0.0
    %750 = vmatpush1.msra.mxu0 0.0
    %751 = vmatprep.subr.mxu0 0.0
    %752 = vmatpush1.msra.mxu0 0.0
    %753 = vmatprep.subr.mxu0 0.0
    %754 = vmatpush1.msra.mxu0 0.0
    %755 = vmatprep.subr.mxu0 0.0
    %756 = vmatpush1.msra.mxu0 0.0
    %757 = vmatprep.subr.mxu0 0.0
    %758 = vmatpush1.msra.mxu0 0.0
    %759 = vmatprep.subr.mxu0 0.0
    %760 = vmatpush1.msra.mxu0 0.0
    %761 = vmatprep.subr.mxu0 0.0
    %762 = vmatpush1.msra.mxu0 0.0
    %763 = vmatprep.subr.mxu0 0.0
    %764 = vmatpush1.msra.mxu0 0.0
    %765 = vmatprep.subr.mxu0 0.0
    %766 = vmatpush1.msra.mxu0 0.0
    %767 = vmatprep.subr.mxu0 0.0
    %768 = vmatpush1.msra.mxu0 0.0
    %769 = vmatprep.subr.mxu0 0.0
    %770 = vmatpush1.msra.mxu0 0.0
    %771 = vmatprep.subr.mxu0 0.0
    %772 = vmatpush1.msra.mxu0 0.0
    %773 = vmatprep.subr.mxu0 0.0
    %774 = vmatpush1.msra.mxu0 0.0
    %775 = vmatprep.subr.mxu0 0.0
    %776 = vmatpush1.msra.mxu0 0.0
    %777 = vmatprep.subr.mxu0 0.0
    %778 = vmatpush1.msra.mxu0 0.0
    %779 = vmatprep.subr.mxu0 0.0
    %780 = vmatpush1.msra.mxu0 0.0
    %781 = vmatprep.subr.mxu0 0.0
    %782 = vmatpush1.msra.mxu0 0.0
    %783 = vmatprep.subr.mxu0 0.0
    %784 = vmatpush1.msra.mxu0 0.0
    %785 = vmatprep.subr.mxu0 0.0
    %786 = vmatpush1.msra.mxu0 0.0
    %787 = vmatprep.subr.mxu0 0.0
    %788 = vmatpush1.msra.mxu0 0.0
    %789 = vmatprep.subr.mxu0 0.0
    %790 = vmatpush1.msra.mxu0 0.0
    %791 = vmatprep.subr.mxu0 0.0
    %792 = vmatpush1.msra.mxu0 0.0
    %793 = vmatprep.mubr.f32.mxu0 0.0
    %794 = vmatmul.mubr.f32.gmra.mrb[0].mxu0 %v727
    %v795 = vpop.f32.mrb[0].mxu0
    %v796 = vadd.f32 0.0, %v795
    %v797 = vpop.f32.mrb[0].mxu0
    %798 = vdwg.mxu0
    %v799 = vsel %vm723, 1, 0
    %v800 = vcvt.s32.f32 %v799
    %v802 = vsel %vm613, %v800, 0
    %804 = vmatprep.subr.mxu0 0.0
    %805 = vmatpush1.msra.mxu0 1.0
    %806 = vmatprep.subr.mxu0 0.0
    %807 = vmatpush1.msra.mxu0 1.0
    %808 = vmatprep.subr.mxu0 0.0
    %809 = vmatpush1.msra.mxu0 0.0
    %810 = vmatprep.subr.mxu0 0.0
    %811 = vmatpush1.msra.mxu0 0.0
    %812 = vmatprep.subr.mxu0 0.0
    %813 = vmatpush1.msra.mxu0 0.0
    %814 = vmatprep.subr.mxu0 0.0
    %815 = vmatpush1.msra.mxu0 0.0
    %816 = vmatprep.subr.mxu0 0.0
    %817 = vmatpush1.msra.mxu0 0.0
    %818 = vmatprep.subr.mxu0 0.0
    %819 = vmatpush1.msra.mxu0 0.0
    %820 = vmatprep.subr.mxu0 0.0
    %821 = vmatpush1.msra.mxu0 0.0
    %822 = vmatprep.subr.mxu0 0.0
    %823 = vmatpush1.msra.mxu0 0.0
    %824 = vmatprep.subr.mxu0 0.0
    %825 = vmatpush1.msra.mxu0 0.0
    %826 = vmatprep.subr.mxu0 0.0
    %827 = vmatpush1.msra.mxu0 0.0
    %828 = vmatprep.subr.mxu0 0.0
    %829 = vmatpush1.msra.mxu0 0.0
    %830 = vmatprep.subr.mxu0 0.0
    %831 = vmatpush1.msra.mxu0 0.0
    %832 = vmatprep.subr.mxu0 0.0
    %833 = vmatpush1.msra.mxu0 0.0
    %834 = vmatprep.subr.mxu0 0.0
    %835 = vmatpush1.msra.mxu0 0.0
    %836 = vmatprep.subr.mxu0 0.0
    %837 = vmatpush1.msra.mxu0 0.0
    %838 = vmatprep.subr.mxu0 0.0
    %839 = vmatpush1.msra.mxu0 0.0
    %840 = vmatprep.subr.mxu0 0.0
    %841 = vmatpush1.msra.mxu0 0.0
    %842 = vmatprep.subr.mxu0 0.0
    %843 = vmatpush1.msra.mxu0 0.0
    %844 = vmatprep.subr.mxu0 0.0
    %845 = vmatpush1.msra.mxu0 0.0
    %846 = vmatprep.subr.mxu0 0.0
    %847 = vmatpush1.msra.mxu0 0.0
    %848 = vmatprep.subr.mxu0 0.0
    %849 = vmatpush1.msra.mxu0 0.0
    %850 = vmatprep.subr.mxu0 0.0
    %851 = vmatpush1.msra.mxu0 0.0
    %852 = vmatprep.subr.mxu0 0.0
    %853 = vmatpush1.msra.mxu0 0.0
    %854 = vmatprep.subr.mxu0 0.0
    %855 = vmatpush1.msra.mxu0 0.0
    %856 = vmatprep.subr.mxu0 0.0
    %857 = vmatpush1.msra.mxu0 0.0
    %858 = vmatprep.subr.mxu0 0.0
    %859 = vmatpush1.msra.mxu0 0.0
    %860 = vmatprep.subr.mxu0 0.0
    %861 = vmatpush1.msra.mxu0 0.0
    %862 = vmatprep.subr.mxu0 0.0
    %863 = vmatpush1.msra.mxu0 0.0
    %864 = vmatprep.subr.mxu0 0.0
    %865 = vmatpush1.msra.mxu0 0.0
    %866 = vmatprep.subr.mxu0 0.0
    %867 = vmatpush1.msra.mxu0 0.0
    %868 = vmatprep.mubr.f32.mxu0 0.0
    %869 = vmatmul.mubr.f32.gmra.mrb[0].mxu0 %v802
    %v870 = vpop.f32.mrb[0].mxu0
    %v871 = vadd.f32 0.0, %v870
    %v872 = vpop.f32.mrb[0].mxu0
    %873 = vdwg.mxu0
    %vm874 = vcmp.gt.f32.partialorder %v796, 0.0
    %vm875 = vcmp.gt.f32.partialorder %v871, 0.0
    %vm876 = vmand %vm874, %vm875
    %v877 = vsel %vm876, 1, 0
    %v878 = vcvt.s32.f32 %v877
    %v879 = vsub.f32 %v556, 1.0
    %v880 = vmul.f32 %v879, 2.0
    %v881 = vmul.f32 %v880, 1.442695
    %v882 = vpow.pop %v881
    %v883 = vsel %vm723, %v882, 0.0
    %v885 = vsel %vm613, %v883, 0
    %887 = vmatprep.subr.mxu0 0.0
    %888 = vmatpush1.msra.mxu0 1.0
    %889 = vmatprep.subr.mxu0 0.0
    %890 = vmatpush1.msra.mxu0 1.0
    %891 = vmatprep.subr.mxu0 0.0
    %892 = vmatpush1.msra.mxu0 0.0
    %893 = vmatprep.subr.mxu0 0.0
    %894 = vmatpush1.msra.mxu0 0.0
    %895 = vmatprep.subr.mxu0 0.0
    %896 = vmatpush1.msra.mxu0 0.0
    %897 = vmatprep.subr.mxu0 0.0
    %898 = vmatpush1.msra.mxu0 0.0
    %899 = vmatprep.subr.mxu0 0.0
    %900 = vmatpush1.msra.mxu0 0.0
    %901 = vmatprep.subr.mxu0 0.0
    %902 = vmatpush1.msra.mxu0 0.0
    %903 = vmatprep.subr.mxu0 0.0
    %904 = vmatpush1.msra.mxu0 0.0
    %905 = vmatprep.subr.mxu0 0.0
    %906 = vmatpush1.msra.mxu0 0.0
    %907 = vmatprep.subr.mxu0 0.0
    %908 = vmatpush1.msra.mxu0 0.0
    %909 = vmatprep.subr.mxu0 0.0
    %910 = vmatpush1.msra.mxu0 0.0
    %911 = vmatprep.subr.mxu0 0.0
    %912 = vmatpush1.msra.mxu0 0.0
    %913 = vmatprep.subr.mxu0 0.0
    %914 = vmatpush1.msra.mxu0 0.0
    %915 = vmatprep.subr.mxu0 0.0
    %916 = vmatpush1.msra.mxu0 0.0
    %917 = vmatprep.subr.mxu0 0.0
    %918 = vmatpush1.msra.mxu0 0.0
    %919 = vmatprep.subr.mxu0 0.0
    %920 = vmatpush1.msra.mxu0 0.0
    %921 = vmatprep.subr.mxu0 0.0
    %922 = vmatpush1.msra.mxu0 0.0
    %923 = vmatprep.subr.mxu0 0.0
    %924 = vmatpush1.msra.mxu0 0.0
    %925 = vmatprep.subr.mxu0 0.0
    %926 = vmatpush1.msra.mxu0 0.0
    %927 = vmatprep.subr.mxu0 0.0
    %928 = vmatpush1.msra.mxu0 0.0
    %929 = vmatprep.subr.mxu0 0.0
    %930 = vmatpush1.msra.mxu0 0.0
    %931 = vmatprep.subr.mxu0 0.0
    %932 = vmatpush1.msra.mxu0 0.0
    %933 = vmatprep.subr.mxu0 0.0
    %934 = vmatpush1.msra.mxu0 0.0
    %935 = vmatprep.subr.mxu0 0.0
    %936 = vmatpush1.msra.mxu0 0.0
    %937 = vmatprep.subr.mxu0 0.0
    %938 = vmatpush1.msra.mxu0 0.0
    %939 = vmatprep.subr.mxu0 0.0
    %940 = vmatpush1.msra.mxu0 0.0
    %941 = vmatprep.subr.mxu0 0.0
    %942 = vmatpush1.msra.mxu0 0.0
    %943 = vmatprep.subr.mxu0 0.0
    %944 = vmatpush1.msra.mxu0 0.0
    %945 = vmatprep.subr.mxu0 0.0
    %946 = vmatpush1.msra.mxu0 0.0
    %947 = vmatprep.subr.mxu0 0.0
    %948 = vmatpush1.msra.mxu0 0.0
    %949 = vmatprep.subr.mxu0 0.0
    %950 = vmatpush1.msra.mxu0 0.0
    %951 = vmatprep.mubr.f32.mxu0 0.0
    %952 = vmatmul.mubr.f32.gmra.mrb[0].mxu0 %v885
    %v953 = vpop.f32.mrb[0].mxu0
    %v954 = vadd.f32 0.0, %v953
    %v955 = vpop.f32.mrb[0].mxu0
    %956 = vdwg.mxu0
    %958 = vset.pattern.permute.xlu0 0
    %959 = vperm.xlu0 %958, %v954
    %v960 = vpop.permute.xlu0 %959
    %v962 = vadd.f32 %v882, %v960
    %v963 = vlog2.pop %v962
    %v964 = vmul.f32 %v963, 0.6931472
    %v965 = vsub.f32 %v964, %v880
    %v966 = vsel %vm721, %v965, 0.0
    %v968 = vsel %vm613, %v966, 0
    %970 = vmatprep.subr.mxu0 0.0
    %971 = vmatpush1.msra.mxu0 1.0
    %972 = vmatprep.subr.mxu0 0.0
    %973 = vmatpush1.msra.mxu0 1.0
    %974 = vmatprep.subr.mxu0 0.0
    %975 = vmatpush1.msra.mxu0 0.0
    %976 = vmatprep.subr.mxu0 0.0
    %977 = vmatpush1.msra.mxu0 0.0
    %978 = vmatprep.subr.mxu0 0.0
    %979 = vmatpush1.msra.mxu0 0.0
    %980 = vmatprep.subr.mxu0 0.0
    %981 = vmatpush1.msra.mxu0 0.0
    %982 = vmatprep.subr.mxu0 0.0
    %983 = vmatpush1.msra.mxu0 0.0
    %984 = vmatprep.subr.mxu0 0.0
    %985 = vmatpush1.msra.mxu0 0.0
    %986 = vmatprep.subr.mxu0 0.0
    %987 = vmatpush1.msra.mxu0 0.0
    %988 = vmatprep.subr.mxu0 0.0
    %989 = vmatpush1.msra.mxu0 0.0
    %990 = vmatprep.subr.mxu0 0.0
    %991 = vmatpush1.msra.mxu0 0.0
    %992 = vmatprep.subr.mxu0 0.0
    %993 = vmatpush1.msra.mxu0 0.0
    %994 = vmatprep.subr.mxu0 0.0
    %995 = vmatpush1.msra.mxu0 0.0
    %996 = vmatprep.subr.mxu0 0.0
    %997 = vmatpush1.msra.mxu0 0.0
    %998 = vmatprep.subr.mxu0 0.0
    %999 = vmatpush1.msra.mxu0 0.0
    %1000 = vmatprep.subr.mxu0 0.0
    %1001 = vmatpush1.msra.mxu0 0.0
    %1002 = vmatprep.subr.mxu0 0.0
    %1003 = vmatpush1.msra.mxu0 0.0
    %1004 = vmatprep.subr.mxu0 0.0
    %1005 = vmatpush1.msra.mxu0 0.0
    %1006 = vmatprep.subr.mxu0 0.0
    %1007 = vmatpush1.msra.mxu0 0.0
    %1008 = vmatprep.subr.mxu0 0.0
    %1009 = vmatpush1.msra.mxu0 0.0
    %1010 = vmatprep.subr.mxu0 0.0
    %1011 = vmatpush1.msra.mxu0 0.0
    %1012 = vmatprep.subr.mxu0 0.0
    %1013 = vmatpush1.msra.mxu0 0.0
    %1014 = vmatprep.subr.mxu0 0.0
    %1015 = vmatpush1.msra.mxu0 0.0
    %1016 = vmatprep.subr.mxu0 0.0
    %1017 = vmatpush1.msra.mxu0 0.0
    %1018 = vmatprep.subr.mxu0 0.0
    %1019 = vmatpush1.msra.mxu0 0.0
    %1020 = vmatprep.subr.mxu0 0.0
    %1021 = vmatpush1.msra.mxu0 0.0
    %1022 = vmatprep.subr.mxu0 0.0
    %1023 = vmatpush1.msra.mxu0 0.0
    %1024 = vmatprep.subr.mxu0 0.0
    %1025 = vmatpush1.msra.mxu0 0.0
    %1026 = vmatprep.subr.mxu0 0.0
    %1027 = vmatpush1.msra.mxu0 0.0
    %1028 = vmatprep.subr.mxu0 0.0
    %1029 = vmatpush1.msra.mxu0 0.0
    %1030 = vmatprep.subr.mxu0 0.0
    %1031 = vmatpush1.msra.mxu0 0.0
    %1032 = vmatprep.subr.mxu0 0.0
    %1033 = vmatpush1.msra.mxu0 0.0
    %1034 = vmatprep.mubr.f32.mxu0 0.0
    %1035 = vmatmul.mubr.f32.gmra.mrb[0].mxu0 %v968
    %v1036 = vpop.f32.mrb[0].mxu0
    %v1037 = vadd.f32 0.0, %v1036
    %v1038 = vpop.f32.mrb[0].mxu0
    %1039 = vdwg.mxu0
    %v1040 = vmax.f32 %v796, 1.0
    %v1041 = vrcp.pop %v1040
    %v1042 = vmul.f32 %v1037, %v1041
    %vm1043 = vcmask 3072
    %v1044 = vsel %vm1043, %v878, 0.0
    %1045 = vadd.xlane.f32.xlu0 %v1044
    %v1046 = vpop.xlane.xlu0 %1045
    %v1047 = vrot.slane %v1046, 4
    %v1048 = vadd.f32 %v1046, %v1047
    %v1049 = vrot.slane %v1048, 2
    %v1050 = vadd.f32 %v1048, %v1049
    %v1051 = vrot.slane %v1050, 1
    %v1052 = vadd.f32 %v1050, %v1051
    %s1053 = vtos %v1052
    %v1054 = vmul.f32 %v1042, %v878
    %v1055 = vsel %vm1043, %v1054, 0.0
    %1056 = vadd.xlane.f32.xlu0 %v1055
    %v1057 = vpop.xlane.xlu0 %1056
    %v1058 = vrot.slane %v1057, 4
    %v1059 = vadd.f32 %v1057, %v1058
    %v1060 = vrot.slane %v1059, 2
    %v1061 = vadd.f32 %v1059, %v1060
    %v1062 = vrot.slane %v1061, 1
    %v1063 = vadd.f32 %v1061, %v1062
    %s1064 = vtos %v1063
    %s1065 = smax.f32 %s1053, 1.0
    %v1066 = vstv %s1065
    %v1067 = vrcp.pop %v1066
    %s1068 = vtos %v1067
    %s1069 = smul.f32 %s1064, %s1068
    %1070 = vmatprep.subr.mxu0 0.0
    %1071 = vmatpush1.xpose.msra.mxu0 %v241
    %1072 = vmatprep.subr.mxu0 0.0
    %1073 = vmatpush1.xpose.msra.mxu0 0.0
    %1074 = vmatprep.subr.mxu0 0.0
    %1075 = vmatpush1.xpose.msra.mxu0 0.0
    %1076 = vmatprep.subr.mxu0 0.0
    %1077 = vmatpush1.xpose.msra.mxu0 0.0
    %1078 = vmatprep.subr.mxu0 0.0
    %1079 = vmatpush1.xpose.msra.mxu0 0.0
    %1080 = vmatprep.subr.mxu0 0.0
    %1081 = vmatpush1.xpose.msra.mxu0 0.0
    %1082 = vmatprep.subr.mxu0 0.0
    %1083 = vmatpush1.xpose.msra.mxu0 0.0
    %1084 = vmatprep.subr.mxu0 0.0
    %1085 = vmatpush1.xpose.msra.mxu0 0.0
    %1086 = vmatprep.subr.mxu0 0.0
    %1087 = vmatpush1.xpose.msra.mxu0 0.0
    %1088 = vmatprep.subr.mxu0 0.0
    %1089 = vmatpush1.xpose.msra.mxu0 0.0
    %1090 = vmatprep.subr.mxu0 0.0
    %1091 = vmatpush1.xpose.msra.mxu0 0.0
    %1092 = vmatprep.subr.mxu0 0.0
    %1093 = vmatpush1.xpose.msra.mxu0 0.0
    %1094 = vmatprep.subr.mxu0 0.0
    %1095 = vmatpush1.xpose.msra.mxu0 0.0
    %1096 = vmatprep.subr.mxu0 0.0
    %1097 = vmatpush1.xpose.msra.mxu0 0.0
    %1098 = vmatprep.subr.mxu0 0.0
    %1099 = vmatpush1.xpose.msra.mxu0 0.0
    %1100 = vmatprep.subr.mxu0 0.0
    %1101 = vmatpush1.xpose.msra.mxu0 0.0
    %1102 = vmatprep.subr.mxu0 0.0
    %1103 = vmatpush1.xpose.msra.mxu0 0.0
    %1104 = vmatprep.subr.mxu0 0.0
    %1105 = vmatpush1.xpose.msra.mxu0 0.0
    %1106 = vmatprep.subr.mxu0 0.0
    %1107 = vmatpush1.xpose.msra.mxu0 0.0
    %1108 = vmatprep.subr.mxu0 0.0
    %1109 = vmatpush1.xpose.msra.mxu0 0.0
    %1110 = vmatprep.subr.mxu0 0.0
    %1111 = vmatpush1.xpose.msra.mxu0 0.0
    %1112 = vmatprep.subr.mxu0 0.0
    %1113 = vmatpush1.xpose.msra.mxu0 0.0
    %1114 = vmatprep.subr.mxu0 0.0
    %1115 = vmatpush1.xpose.msra.mxu0 0.0
    %1116 = vmatprep.subr.mxu0 0.0
    %1117 = vmatpush1.xpose.msra.mxu0 0.0
    %1118 = vmatprep.subr.mxu0 0.0
    %1119 = vmatpush1.xpose.msra.mxu0 0.0
    %1120 = vmatprep.subr.mxu0 0.0
    %1121 = vmatpush1.xpose.msra.mxu0 0.0
    %1122 = vmatprep.subr.mxu0 0.0
    %1123 = vmatpush1.xpose.msra.mxu0 0.0
    %1124 = vmatprep.subr.mxu0 0.0
    %1125 = vmatpush1.xpose.msra.mxu0 0.0
    %1126 = vmatprep.subr.mxu0 0.0
    %1127 = vmatpush1.xpose.msra.mxu0 0.0
    %1128 = vmatprep.subr.mxu0 0.0
    %1129 = vmatpush1.xpose.msra.mxu0 0.0
    %1130 = vmatprep.subr.mxu0 0.0
    %1131 = vmatpush1.xpose.msra.mxu0 0.0
    %1132 = vmatprep.subr.mxu0 0.0
    %1133 = vmatpush1.xpose.msra.mxu0 0.0
    %1134 = vmatprep.mubr.f32.mxu0 0.0
    %1135 = vmatmul.mubr.f32.gmra.mrb[0].mxu0 %v241
    %v1136 = vpop.f32.mrb[0].mxu0
    %v1137 = vadd.f32 0.0, %v1136
    %v1138 = vpop.f32.mrb[0].mxu0
    %1139 = vdwg.mxu0
    %v1140 = vlaneseq
    %v1141 = vshrl.u32 %v1140, 7
    %v1142 = vsub.s32 0, %v1141
    %v1143 = vrot.slane %v463, %v1142
    %v1144 = vadd.f32 %v547, %v1143
    %v1145 = vmul.f32 %v1137, 2.0
    %v1146 = vsub.f32 %v1144, %v1145
    %v1147 = vmax.f32 %v1146, 0.0
    %v1148 = vrsqrt.pop %v1147
    %v1149 = vmul.f32 %v1147, %v1148
    %vm1150 = vcmp.eq.f32.partialorder %v1147, inf
    %v1151 = vsel %vm1150, %v1147, %v1149
    %vm1152 = vcmp.eq.f32.partialorder %v1147, 0.0
    %v1153 = vand.u32 %v1147, 2147483648
    %v1154 = vsel %vm1152, %v1153, %v1151
    %vm1155 = vcmask 27648
    %v1156 = vsel %vm1155, %v1154, 0.0
    %1157 = vadd.xlane.f32.xlu0 %v1156
    %v1158 = vpop.xlane.xlu0 %1157
    %v1159 = vrot.slane %v1158, 4
    %v1160 = vadd.f32 %v1158, %v1159
    %v1161 = vrot.slane %v1160, 2
    %v1162 = vadd.f32 %v1160, %v1161
    %v1163 = vrot.slane %v1162, 1
    %v1164 = vadd.f32 %v1162, %v1163
    %s1165 = vtos %v1164
    %s1166 = smul.f32 %s1165, 0.5
    %s1167 = ssub.f32 0.0, %s1166
    %v1168 = vrcp.pop 6.0
    %s1169 = vtos %v1168
    %s1170 = smul.f32 %s1167, %s1169
    %s1171 = sadd.f32 %s1069, %s1170
    %s1172 = scalar_lea.smem [#allocation2], 0
    %1173 = sst [smem:[%s1172]] %s1171
    // Predicated region
    $region30: #{peroid_cluster_forward.1} parent=1 // pred_check
      _
    $region31: #{peroid_cluster_forward.1} parent=1 // pred_check_branch
      %1175 = sbr.rel (0) target = $region33
    $region32: #{peroid_cluster_forward.1} parent=1 // pred_region
      %s1177 = ssub.s32 16, 16
      %1178 = vsyncadd [#allocation3], %s1177
      %1181 = dma.smem_to_hbm [#allocation2], 16, %s7, [#allocation3]
    $region33: #{peroid_cluster_forward.1} parent=1 // pred_fallthru
      _
    // Predicated region
    $region34: #{peroid_cluster_forward.1} parent=1 // pred_check
      _
    $region35: #{peroid_cluster_forward.1} parent=1 // pred_check_branch
      %1183 = sbr.rel (0) target = $region37
    $region36: #{peroid_cluster_forward.1} parent=1 // pred_region
      %1184 = dma.done [#allocation3], 16
    $region37: #{peroid_cluster_forward.1} parent=1 // pred_fallthru
      _
    %1185 = sfence
    %1186 = vsyncpa [#allocation3], 1

</llo_original>
